<compile_context>
chip_gen: v7x
topology: tpu7x:2x2x1
jax: 0.10.0
libtpu: 0.0.40
codegen_flags: <defaults>
</compile_context>

<pallas_src>
import re

import jax
import jax.numpy as jnp
from jax.experimental import pallas as pl
from jax.experimental.pallas import tpu as pltpu


# ---------------------------------------------------------------------------
# generation-aware tuning knobs
# ---------------------------------------------------------------------------
def _round_up(x, m):
    return (x + m - 1) // m * m


def _tpu_generation():
    try:
        kind = jax.devices()[0].device_kind.lower()
        m = re.search(r"v(\d+)", kind)
        if m:
            return int(m.group(1))
    except Exception:
        pass
    return 6


_TPU_GEN = _tpu_generation()
# v7x has only 64 MiB VMEM per TensorCore -- leave headroom for the surrounding
# XLA fusions (im2col slices, concats, upsample, transposes).
_VMEM_LIMIT = (32 if _TPU_GEN >= 7 else 48) * 1024 * 1024
# Largest K tile we allow (multiple of 128); fewer k-steps => less per-step
# pipeline overhead and fewer full accumulate passes.
_TK_MAX = 3840


def _tk_for(k):
    """K tile: full K when small, else largest multiple-of-128 divisor <= _TK_MAX."""
    if k <= 4096:
        return k
    assert k % 128 == 0, k
    d = k // 128
    best = 1
    for cand in range(1, _TK_MAX // 128 + 1):
        if d % cand == 0:
            best = cand
    return 128 * best


def _tn_for(n):
    """v7x has 2 TensorCores: split N so the 'parallel' j axis has extent 2 and
    each core streams half of the weight matrix.  Single-TC chips keep N whole."""
    if _TPU_GEN >= 7 and n >= 512 and (n // 2) % 128 == 0:
        return n // 2
    return n


# ---------------------------------------------------------------------------
# Pallas kernels
# ---------------------------------------------------------------------------
def _mm_bias_kernel(a_ref, b_ref, bias_ref, o_ref, acc_ref):
    # o = a @ b + bias.  f32 accumulation in VMEM scratch, single output store.
    k = pl.program_id(2)

    @pl.when(k == 0)
    def _():
        acc_ref[...] = jnp.broadcast_to(bias_ref[...], acc_ref.shape)

    acc_ref[...] += jnp.dot(a_ref[...], b_ref[...],
                            preferred_element_type=jnp.float32)

    @pl.when(k == pl.num_programs(2) - 1)
    def _():
        o_ref[...] = acc_ref[...].astype(o_ref.dtype)


def _mm_bias_res_kernel(a_ref, b_ref, bias_ref, res_ref, o_ref, acc_ref):
    # o = a @ b + bias + res  (residual streamed in bf16, upcast in the epilogue).
    k = pl.program_id(2)

    @pl.when(k == 0)
    def _():
        acc_ref[...] = res_ref[...].astype(jnp.float32) + bias_ref[...]

    acc_ref[...] += jnp.dot(a_ref[...], b_ref[...],
                            preferred_element_type=jnp.float32)

    @pl.when(k == pl.num_programs(2) - 1)
    def _():
        o_ref[...] = acc_ref[...].astype(o_ref.dtype)


def matmul_bias(a, b, bias, res=None, out_dtype=jnp.bfloat16):
    """(M,K) @ (K,N) + bias[(1,N)] (+ res[(M,N)]).  bf16 operands, f32 accumulate."""
    M, K = a.shape
    Kb, N = b.shape
    assert K == Kb, (K, Kb)
    bias = jnp.asarray(bias, jnp.float32).reshape(1, N)

    if M <= 2:
        # tiny time-MLP matmuls: not worth a pallas_call, plain XLA.
        y = jnp.dot(a.astype(jnp.bfloat16), b,
                    preferred_element_type=jnp.float32) + bias
        if res is not None:
            y = y + res.astype(jnp.float32)
        return y.astype(out_dtype)

    a = a.astype(jnp.bfloat16)
    b = b.astype(jnp.bfloat16)

    if M <= 256:
        tm, Mp = M, M
    else:
        tm = 256
        Mp = _round_up(M, 256)
    if Mp != M:
        a = jnp.pad(a, ((0, Mp - M), (0, 0)))
        if res is not None:
            res = jnp.pad(res.astype(jnp.bfloat16), ((0, Mp - M), (0, 0)))

    tn = _tn_for(N)
    tk = _tk_for(K)
    ksteps = K // tk

    in_specs = [pl.BlockSpec((tm, tk), lambda i, j, k: (i, k)),
                pl.BlockSpec((tk, tn), lambda i, j, k: (k, j)),
                pl.BlockSpec((1, tn), lambda i, j, k: (0, j))]
    args = [a, b, bias]
    kernel = _mm_bias_kernel
    if res is not None:
        in_specs.append(pl.BlockSpec((tm, tn), lambda i, j, k: (i, j)))
        args.append(res.astype(jnp.bfloat16))
        kernel = _mm_bias_res_kernel

    out = pl.pallas_call(
        kernel,
        out_shape=jax.ShapeDtypeStruct((Mp, N), out_dtype),
        grid_spec=pltpu.PrefetchScalarGridSpec(
            num_scalar_prefetch=0,
            grid=(Mp // tm, N // tn, ksteps),
            in_specs=in_specs,
            out_specs=pl.BlockSpec((tm, tn), lambda i, j, k: (i, j)),
            scratch_shapes=[pltpu.VMEM((tm, tn), jnp.float32)]),
        compiler_params=pltpu.CompilerParams(
            dimension_semantics=("parallel", "parallel", "arbitrary"),
            vmem_limit_bytes=_VMEM_LIMIT),
    )(*args)
    return out if Mp == M else out[:M]


def _gn_silu_kernel(x_ref, w_ref, b_ref, gm_ref, gmt_ref, o_ref):
    # One sample per program: x block (1, HW, C), channels on lanes (lane-dense).
    x = x_ref[0].astype(jnp.float32)                       # (HW, C)
    hw, c = x.shape
    g = gm_ref.shape[1]
    cg = c // g
    inv = 1.0 / float(hw * cg)

    csum = jnp.sum(x, axis=0, keepdims=True)               # (1, C)
    csum2 = jnp.sum(x * x, axis=0, keepdims=True)          # (1, C)
    gsum = jnp.dot(csum, gm_ref[...], preferred_element_type=jnp.float32)    # (1, G)
    gsum2 = jnp.dot(csum2, gm_ref[...], preferred_element_type=jnp.float32)  # (1, G)

    mean_g = gsum * inv
    var_g = jnp.maximum(gsum2 * inv - mean_g * mean_g, 0.0)  # biased var (PyTorch GN)
    rstd_g = jax.lax.rsqrt(var_g + 1e-5)

    mean_c = jnp.dot(mean_g, gmt_ref[...], preferred_element_type=jnp.float32)  # (1, C)
    rstd_c = jnp.dot(rstd_g, gmt_ref[...], preferred_element_type=jnp.float32)  # (1, C)

    y = (x - mean_c) * rstd_c * w_ref[...] + b_ref[...]
    o_ref[0] = (y * jax.nn.sigmoid(y)).astype(o_ref.dtype)   # fused SiLU


_GMAP_CACHE = {}


def _group_maps(c, groups=32):
    key = (c, groups)
    if key not in _GMAP_CACHE:
        cg = c // groups
        gm = jnp.repeat(jnp.eye(groups, dtype=jnp.float32), cg, axis=0)   # (C, G)
        _GMAP_CACHE[key] = (gm, gm.T)                                     # (C,G), (G,C)
    return _GMAP_CACHE[key]


def group_norm_silu(x, w, b, groups=32):
    """GroupNorm(32, eps=1e-5, affine) + SiLU, directly on NHWC.  Returns bf16."""
    # TODO(synk): on v7x this single-program kernel uses only one TensorCore;
    # split HW with partial-sum stats once batch/resolution grow.
    N, H, W, C = x.shape
    HW = H * W
    gm, gmt = _group_maps(C, groups)
    xr = x.reshape(N, HW, C)
    out = pl.pallas_call(
        _gn_silu_kernel,
        out_shape=jax.ShapeDtypeStruct((N, HW, C), jnp.bfloat16),
        grid_spec=pltpu.PrefetchScalarGridSpec(
            num_scalar_prefetch=0,
            grid=(N,),
            in_specs=[pl.BlockSpec((1, HW, C), lambda n: (n, 0, 0)),
                      pl.BlockSpec((1, C), lambda n: (0, 0)),
                      pl.BlockSpec((1, C), lambda n: (0, 0)),
                      pl.BlockSpec((C, groups), lambda n: (0, 0)),
                      pl.BlockSpec((groups, C), lambda n: (0, 0))],
            out_specs=pl.BlockSpec((1, HW, C), lambda n: (n, 0, 0))),
        compiler_params=pltpu.CompilerParams(
            dimension_semantics=("parallel",)),
    )(xr, w.reshape(1, C), b.reshape(1, C), gm, gmt)
    return out.reshape(N, H, W, C)


# ---------------------------------------------------------------------------
# ops built on the Pallas matmul
# ---------------------------------------------------------------------------
def silu(x):
    # TODO(synk): tiny (1,1280) time-MLP SiLU kept in plain JAX (not a hot path)
    return x * jax.nn.sigmoid(x)


def conv2d(x, cw, stride=1, bias=None, res=None, out_dtype=jnp.bfloat16):
    """Conv2d from a prepped weight dict (bf16 matmul layout).  x: NHWC.

    bias: optional (1,Cout) override (fuses the time-embedding add);
    res:  optional NHWC residual fused into the matmul epilogue.
    """
    kh, kw, cin, cin_pad = cw['kh'], cw['kw'], cw['cin'], cw['cin_pad']
    N, H, W, C = x.shape
    assert C == cin, (C, cin)
    cout = cw['mat'].shape[1]
    if bias is None:
        bias = cw['bias']
    xb = x.astype(jnp.bfloat16)

    if kh == 1 and kw == 1:
        if cin_pad != cin:
            xb = jnp.pad(xb, ((0, 0), (0, 0), (0, 0), (0, cin_pad - cin)))
        a = xb.reshape(N * H * W, cin_pad)
        Ho, Wo = H, W
    else:
        # TODO(synk): im2col is still materialized (bf16); in-kernel shifted
        # windows (pl.ds / manual DMA) only matter at much larger resolutions.
        pad = 1
        # channel padding (for the cin=960 convs) is fused into the spatial pad
        xp = jnp.pad(xb, ((0, 0), (pad, pad), (pad, pad), (0, cin_pad - cin)))
        Ho = (H + 2 * pad - kh) // stride + 1
        Wo = (W + 2 * pad - kw) // stride + 1
        patches = []
        for dy in range(kh):
            for dx in range(kw):
                patches.append(xp[:, dy:dy + stride * (Ho - 1) + 1:stride,
                                  dx:dx + stride * (Wo - 1) + 1:stride, :])
        a = jnp.stack(patches, axis=3).reshape(N * Ho * Wo, kh * kw * cin_pad)

    rflat = None if res is None else res.reshape(N * Ho * Wo, cout)
    y = matmul_bias(a, cw['mat'], bias, rflat, out_dtype=out_dtype)
    return y.reshape(N, Ho, Wo, cout)


def upsample_nearest2x(x):
    return jnp.repeat(jnp.repeat(x, 2, axis=1), 2, axis=2)


# ---------------------------------------------------------------------------
# Deterministic parameter construction (weights pre-packed for the kernels)
# ---------------------------------------------------------------------------
class ParamGen:
    def __init__(self, key):
        self.key = key
        self.count = 0

    def take(self, shape):
        self.count += 1
        k = jax.random.fold_in(self.key, self.count)
        fan_in = 1
        for s in shape[:-1]:
            fan_in *= s
        return jax.random.normal(k, shape, jnp.float32) / jnp.sqrt(float(fan_in))


def _zeros(n):
    return jnp.zeros((n,), jnp.float32)


def _prep_conv(pg, kh, kw, cin, cout):
    # TODO(synk): weight-streaming dominates at low resolution; int8 (v5e/v6e)
    # or fp8 (v7x) weight quantization with per-channel scales folded into the
    # epilogue would halve the HBM stream -- left out to preserve numerics.
    w = pg.take((kh, kw, cin, cout))              # HWIO
    k = kh * kw * cin
    cin_pad = cin
    if k > 4096 and k % 128 != 0:
        # pad the *channel* dim so K becomes a multiple of 128 with good tile
        # divisors (960 -> 1024, K 8640 -> 9216) and the im2col pad is free.
        cin_pad = _round_up(cin, 128)
        w = jnp.pad(w, ((0, 0), (0, 0), (0, cin_pad - cin), (0, 0)))
    mat = w.reshape(kh * kw * cin_pad, cout)
    return dict(mat=mat.astype(jnp.bfloat16),
                bias=jnp.zeros((1, cout), jnp.float32),
                kh=kh, kw=kw, cin=cin, cin_pad=cin_pad)


def _prep_linear(pg, din, dout):
    w = pg.take((din, dout))
    return dict(mat=w.astype(jnp.bfloat16),
                bias=jnp.zeros((1, dout), jnp.float32))


def resnet_params(pg, dim_in, dim_out):
    p = dict(
        time=_prep_linear(pg, 1280, dim_out),
        gn0_w=jnp.ones((dim_in,), jnp.float32), gn0_b=_zeros(dim_in),
        conv0=_prep_conv(pg, 3, 3, dim_in, dim_out),
        gn1_w=jnp.ones((dim_out,), jnp.float32), gn1_b=_zeros(dim_out),
        conv1=_prep_conv(pg, 3, 3, dim_out, dim_out),
    )
    if dim_in != dim_out:
        p['res'] = _prep_conv(pg, 1, 1, dim_in, dim_out)
    return p


def down_block_params(pg, dim_in, dim_out):
    return dict(res0=resnet_params(pg, dim_in, dim_out),
                res1=resnet_params(pg, dim_out, dim_out),
                out=_prep_conv(pg, 3, 3, dim_out, dim_out))


def up_block_params(pg, dim_in, dim_out, dim_prev, add_up):
    p = dict(res0=resnet_params(pg, dim_out + dim_prev, dim_out),
             res1=resnet_params(pg, dim_out + dim_out, dim_out),
             res2=resnet_params(pg, dim_in + dim_out, dim_out))
    if add_up:
        p['out'] = _prep_conv(pg, 3, 3, dim_out, dim_out)
    return p


def unet_params(key):
    pg = ParamGen(key)
    return dict(
        vae=_prep_conv(pg, 3, 3, 4, 320),
        in_time0=_prep_linear(pg, 320, 1280),
        in_time1=_prep_linear(pg, 1280, 1280),
        down_block0=down_block_params(pg, 320, 320),
        down_block1=down_block_params(pg, 320, 640),
        down_block2=down_block_params(pg, 640, 1280),
        down_res0=resnet_params(pg, 1280, 1280),
        down_res1=resnet_params(pg, 1280, 1280),
        mid_res0=resnet_params(pg, 1280, 1280),
        mid_res1=resnet_params(pg, 1280, 1280),
        up_res0=resnet_params(pg, 2560, 1280),
        up_res1=resnet_params(pg, 2560, 1280),
        up_res2=resnet_params(pg, 2560, 1280),
        up_in=_prep_conv(pg, 3, 3, 1280, 1280),
        up_block0=up_block_params(pg, 640, 1280, 1280, True),
        up_block1=up_block_params(pg, 320, 640, 1280, True),
        up_block2=up_block_params(pg, 320, 320, 640, False),
        out_gn_w=jnp.ones((320,), jnp.float32), out_gn_b=_zeros(320),
        out=_prep_conv(pg, 3, 3, 320, 4),
    )


# ---------------------------------------------------------------------------
# Forward pass (mirrors the PyTorch module structure)
# ---------------------------------------------------------------------------
def resnet_fwd(p, x, time_emb):
    # time: SiLU -> Linear(1280, dim_out); broadcast add is folded into conv0 bias.
    t = silu(time_emb)
    t = matmul_bias(t, p['time']['mat'], p['time']['bias'],
                    out_dtype=jnp.float32)                         # (1, dim_out)

    if 'res' in p:
        r = conv2d(x, p['res'])                                    # 1x1 projection (bf16)
    else:
        r = x                                                      # bf16 skip

    h = group_norm_silu(x, p['gn0_w'], p['gn0_b'])
    h = conv2d(h, p['conv0'], bias=p['conv0']['bias'] + t)         # fused +time_emb
    h = group_norm_silu(h, p['gn1_w'], p['gn1_b'])
    h = conv2d(h, p['conv1'], res=r)                               # fused residual add
    return h


def down_block_fwd(p, x, time_emb):
    outs = []
    x = resnet_fwd(p['res0'], x, time_emb); outs.append(x)
    x = resnet_fwd(p['res1'], x, time_emb); outs.append(x)
    x = conv2d(x, p['out'], stride=2); outs.append(x)
    return x, outs


def up_block_fwd(p, x, time_emb, out_down):
    x = resnet_fwd(p['res0'], jnp.concatenate([x, out_down.pop()], axis=-1), time_emb)
    x = resnet_fwd(p['res1'], jnp.concatenate([x, out_down.pop()], axis=-1), time_emb)
    x = resnet_fwd(p['res2'], jnp.concatenate([x, out_down.pop()], axis=-1), time_emb)
    if 'out' in p:
        x = upsample_nearest2x(x)
        x = conv2d(x, p['out'])
    return x


def get_time_embed(t):
    e = jnp.arange(160, dtype=jnp.float32) * (-9.210340371976184 / 160.0)
    e = jnp.exp(e) * t
    return jnp.concatenate([jnp.cos(e), jnp.sin(e)])[None, :]      # (1, 320)


def unet_fwd(P, out_vae_nchw, time_step):
    x = jnp.transpose(out_vae_nchw, (0, 2, 3, 1)).astype(jnp.float32)   # NCHW -> NHWC
    x = conv2d(x, P['vae'])                                              # bf16 NHWC

    te = get_time_embed(time_step)
    te = matmul_bias(te, P['in_time0']['mat'], P['in_time0']['bias'],
                     out_dtype=jnp.float32)
    te = silu(te)
    te = matmul_bias(te, P['in_time1']['mat'], P['in_time1']['bias'],
                     out_dtype=jnp.float32)                              # (1, 1280)

    out_down = [x]
    x, outs = down_block_fwd(P['down_block0'], x, te); out_down += outs
    x, outs = down_block_fwd(P['down_block1'], x, te); out_down += outs
    x, outs = down_block_fwd(P['down_block2'], x, te); out_down += outs
    x = resnet_fwd(P['down_res0'], x, te); out_down.append(x)
    x = resnet_fwd(P['down_res1'], x, te); out_down.append(x)

    x = resnet_fwd(P['mid_res0'], x, te)
    x = resnet_fwd(P['mid_res1'], x, te)

    x = resnet_fwd(P['up_res0'], jnp.concatenate([x, out_down.pop()], -1), te)
    x = resnet_fwd(P['up_res1'], jnp.concatenate([x, out_down.pop()], -1), te)
    x = resnet_fwd(P['up_res2'], jnp.concatenate([x, out_down.pop()], -1), te)

    x = upsample_nearest2x(x)
    x = conv2d(x, P['up_in'])

    x = up_block_fwd(P['up_block0'], x, te, out_down)
    x = up_block_fwd(P['up_block1'], x, te, out_down)
    x = up_block_fwd(P['up_block2'], x, te, out_down)

    x = group_norm_silu(x, P['out_gn_w'], P['out_gn_b'])
    x = conv2d(x, P['out'], out_dtype=jnp.float32)
    return jnp.transpose(x, (0, 3, 1, 2))                          # NHWC -> NCHW


# ---------------------------------------------------------------------------
if __name__ == "__main__":
    key = jax.random.PRNGKey(0)
    params = unet_params(jax.random.fold_in(key, 1))

    # small latent input: batch=1, channels=4, spatial=16 (divisible by 8 for the
    # three stride-2 downsamples / nearest upsamples)
    out_vae = jax.random.normal(jax.random.fold_in(key, 2), (1, 4, 16, 16),
                                jnp.float32)
    time_step = jnp.float32(10.0)

    noise_pred = unet_fwd(params, out_vae, time_step)
    noise_pred = jax.block_until_ready(noise_pred)

    assert noise_pred.shape == (1, 4, 16, 16), noise_pred.shape
    assert bool(jnp.all(jnp.isfinite(noise_pred)))
    print("KERNEL_OK")
</pallas_src>

<mosaic_0001>
module attributes {stable_mosaic.version = 11 : i64} {
  func.func @_mm_bias_kernel(%arg0: i32, %arg1: i32, %arg2: i32, %arg3: memref<256x36xbf16, #tpu.memory_space<vmem>>, %arg4: memref<36x320xbf16, #tpu.memory_space<vmem>>, %arg5: memref<1x320xf32, #tpu.memory_space<vmem>>, %arg6: memref<256x320xbf16, #tpu.memory_space<vmem>>, %arg7: memref<256x320xf32, #tpu.memory_space<vmem>>) attributes {dimension_semantics = [#tpu.dimension_semantics<parallel>, #tpu.dimension_semantics<parallel>, #tpu.dimension_semantics<arbitrary>], iteration_bounds = array<i64: 1, 1, 1>, scalar_prefetch = 0 : i64, scratch_operands = 1 : i64, tpu.core_type = #tpu.core_type<tc>, window_params = [{transform_indices = @transform_0, window_bounds = array<i64: 256, 36>}, {transform_indices = @transform_1, window_bounds = array<i64: 36, 320>}, {transform_indices = @transform_2, window_bounds = array<i64: 1, 320>}, {transform_indices = @transform_3, window_bounds = array<i64: 256, 320>}]} {
    %c0_i32 = arith.constant 0 : i32
    %0 = arith.cmpi eq, %arg2, %c0_i32 : i32
    %1 = arith.extui %0 : i1 to i32
    %c0_i32_0 = arith.constant 0 : i32
    %2 = arith.cmpi ne, %1, %c0_i32_0 : i32
    scf.if %2 {
      %c0_10 = arith.constant 0 : index
      %c0_11 = arith.constant 0 : index
      %12 = vector.load %arg5[%c0_10, %c0_11] : memref<1x320xf32, #tpu.memory_space<vmem>>, vector<1x320xf32>
      %13 = vector.shape_cast %12 : vector<1x320xf32> to vector<1x320xf32>
      %14 = vector.broadcast %13 : vector<1x320xf32> to vector<256x320xf32>
      %c0_12 = arith.constant 0 : index
      %c0_13 = arith.constant 0 : index
      %15 = vector.load %arg7[%c0_12, %c0_13] : memref<256x320xf32, #tpu.memory_space<vmem>>, vector<256x320xf32>
      tpu.vector_store %arg7[%c0_12, %c0_13], %14 {strides = array<i32>} : memref<256x320xf32, #tpu.memory_space<vmem>>, vector<256x320xf32>,
    } else {
    }
    %c0 = arith.constant 0 : index
    %c0_1 = arith.constant 0 : index
    %3 = vector.load %arg7[%c0, %c0_1] : memref<256x320xf32, #tpu.memory_space<vmem>>, vector<256x320xf32>
    %c0_2 = arith.constant 0 : index
    %c0_3 = arith.constant 0 : index
    %4 = vector.load %arg3[%c0_2, %c0_3] : memref<256x36xbf16, #tpu.memory_space<vmem>>, vector<256x36xbf16>
    %c0_4 = arith.constant 0 : index
    %c0_5 = arith.constant 0 : index
    %5 = vector.load %arg4[%c0_4, %c0_5] : memref<36x320xbf16, #tpu.memory_space<vmem>>, vector<36x320xbf16>
    %cst = arith.constant dense<0.000000e+00> : vector<256x320xf32>
    %6 = tpu.matmul %4, %5, %cst {dimension_numbers = #tpu.dot_dimension_numbers<[1], [0], [0], [1], [0, 0, 1, 1], [], []>} : vector<256x36xbf16>, vector<36x320xbf16>, vector<256x320xf32> -> vector<256x320xf32>
    %7 = arith.addf %3, %6 : vector<256x320xf32>
    %c0_6 = arith.constant 0 : index
    %c0_7 = arith.constant 0 : index
    %8 = vector.load %arg7[%c0_6, %c0_7] : memref<256x320xf32, #tpu.memory_space<vmem>>, vector<256x320xf32>
    tpu.vector_store %arg7[%c0_6, %c0_7], %7 {strides = array<i32>} : memref<256x320xf32, #tpu.memory_space<vmem>>, vector<256x320xf32>,
    %c0_i32_8 = arith.constant 0 : i32
    %9 = arith.cmpi eq, %arg2, %c0_i32_8 : i32
    %10 = arith.extui %9 : i1 to i32
    %c0_i32_9 = arith.constant 0 : i32
    %11 = arith.cmpi ne, %10, %c0_i32_9 : i32
    scf.if %11 {
      %c0_10 = arith.constant 0 : index
      %c0_11 = arith.constant 0 : index
      %12 = vector.load %arg7[%c0_10, %c0_11] : memref<256x320xf32, #tpu.memory_space<vmem>>, vector<256x320xf32>
      %13 = arith.truncf %12 : vector<256x320xf32> to vector<256x320xbf16>
      %c0_12 = arith.constant 0 : index
      %c0_13 = arith.constant 0 : index
      %14 = vector.load %arg6[%c0_12, %c0_13] : memref<256x320xbf16, #tpu.memory_space<vmem>>, vector<256x320xbf16>
      tpu.vector_store %arg6[%c0_12, %c0_13], %13 {strides = array<i32>} : memref<256x320xbf16, #tpu.memory_space<vmem>>, vector<256x320xbf16>,
    } else {
    }
    return
  }
  func.func @transform_0(%arg0: i32, %arg1: i32, %arg2: i32) -> (i32, i32) {
    %c0_i32 = arith.constant 0 : i32
    return %arg0, %arg2 : i32, i32
  }
  func.func @transform_1(%arg0: i32, %arg1: i32, %arg2: i32) -> (i32, i32) {
    %c0_i32 = arith.constant 0 : i32
    return %arg2, %arg1 : i32, i32
  }
  func.func @transform_2(%arg0: i32, %arg1: i32, %arg2: i32) -> (i32, i32) {
    %c0_i32 = arith.constant 0 : i32
    %c0_i32_0 = arith.constant 0 : i32
    return %c0_i32, %arg1 : i32, i32
  }
  func.func @transform_3(%arg0: i32, %arg1: i32, %arg2: i32) -> (i32, i32) {
    %c0_i32 = arith.constant 0 : i32
    return %arg0, %arg1 : i32, i32
  }
}

</mosaic_0001>

<llo_original>
// kernel: tpu_custom_call.1
$region0: #{tpu_custom_call.1}
  #allocation0 [shape = 'u32[]', space=smem, size = 0x4, offset = 0x4, fixed_abs, tag = 'smem constant byte address 0x4 - core index']
  #allocation1 [shape = 'u32[144,128]{1,0:T(1,128)}', space=vmem, size = 0x12000, scoped, tag = 'internal scratch']
  #allocation2 [shape = 'f32[256,320]{1,0:T(8,128)}', space=vmem, size = 0x60000, scoped, tag = 'scratch operand']
  %s0 = inlined_call_operand.vmem [shape: bf16[256,36], index: 0, kind: input, shape index: {}]
  %s1 = inlined_call_operand.vmem [shape: bf16[36,320], index: 1, kind: input, shape index: {}]
  %s2 = inlined_call_operand.vmem [shape: f32[1,320], index: 2, kind: input, shape index: {}]
  %s3 = inlined_call_operand.vmem [shape: bf16[256,320], index: 3, kind: output, shape index: {}]
  %s4 = sld [smem:[#allocation0]]
  $region30: #{tpu_custom_call.1} parent=0
    _
  %s6 = ssub.s32 1, %s4
  %s7 = scalar_select 0, %s6, %s4
  // Predicated region
  $region2: #{tpu_custom_call.1} parent=0 // pred_check
    _
  $region3: #{tpu_custom_call.1} parent=0 // pred_check_branch
    %9 = sbr.rel (0) target = $region5
  $region4: #{tpu_custom_call.1} parent=0 // pred_region
    _
  $region5: #{tpu_custom_call.1} parent=0 // pred_fallthru
    _
  // Predicated region
  $region6: #{tpu_custom_call.1} parent=0 // pred_check
    _
  $region7: #{tpu_custom_call.1} parent=0 // pred_check_branch
    %11 = sbr.rel (0) target = $region9
  $region8: #{tpu_custom_call.1} parent=0 // pred_region
    _
  $region9: #{tpu_custom_call.1} parent=0 // pred_fallthru
    _
  // Predicated region
  $region10: #{tpu_custom_call.1} parent=0 // pred_check
    _
  $region11: #{tpu_custom_call.1} parent=0 // pred_check_branch
    %13 = sbr.rel (0) target = $region13
  $region12: #{tpu_custom_call.1} parent=0 // pred_region
    _
  $region13: #{tpu_custom_call.1} parent=0 // pred_fallthru
    _
  %p15 = scmp.eq.s32.totalorder 0, 0
  // Predicated region
  $region14: #{tpu_custom_call.1} parent=0 // pred_check
    %p16 = pneg %p15
  $region15: #{tpu_custom_call.1} parent=0 // pred_check_branch
    %18 = sbr.rel (%p16) target = $region17
  $region16: #{tpu_custom_call.1} parent=0 // pred_region
    %v19 = vld [vmem:[%s2] sm:$0x7]
    %v21 = vlaneseq
    %v22 = vshrl.u32 %v21, 7
    %v23 = vsub.s32 0, %v22
    %v24 = vrot.slane %v19, %v23
    %v25 = vlaneseq
    %v26 = vshrl.u32 %v25, 7
    %v27 = vsub.s32 1, %v26
    %v28 = vrot.slane %v19, %v27
    %v29 = vlaneseq
    %v30 = vshrl.u32 %v29, 7
    %v31 = vsub.s32 2, %v30
    %v32 = vrot.slane %v19, %v31
    %36 = vst [vmem:[#allocation2] sm:$0xff] %v24
    %37 = vst [vmem:[#allocation2 + $0x8] sm:$0xff] %v28
    %vm38 = vcmask 523264
    %39 = vst.msk [vmem:[#allocation2 + $0x10] sm:$0xff] %vm38, %v32
    %40 = vst [vmem:[#allocation2 + $0x18] sm:$0xff] %v24
    %41 = vst [vmem:[#allocation2 + $0x20] sm:$0xff] %v28
    %42 = vst.msk [vmem:[#allocation2 + $0x28] sm:$0xff] %vm38, %v32
    %43 = vst [vmem:[#allocation2 + $0x30] sm:$0xff] %v24
    %44 = vst [vmem:[#allocation2 + $0x38] sm:$0xff] %v28
    %45 = vst.msk [vmem:[#allocation2 + $0x40] sm:$0xff] %vm38, %v32
    %46 = vst [vmem:[#allocation2 + $0x48] sm:$0xff] %v24
    %47 = vst [vmem:[#allocation2 + $0x50] sm:$0xff] %v28
    %48 = vst.msk [vmem:[#allocation2 + $0x58] sm:$0xff] %vm38, %v32
    %49 = vst [vmem:[#allocation2 + $0x60] sm:$0xff] %v24
    %50 = vst [vmem:[#allocation2 + $0x68] sm:$0xff] %v28
    %51 = vst.msk [vmem:[#allocation2 + $0x70] sm:$0xff] %vm38, %v32
    %52 = vst [vmem:[#allocation2 + $0x78] sm:$0xff] %v24
    %53 = vst [vmem:[#allocation2 + $0x80] sm:$0xff] %v28
    %54 = vst.msk [vmem:[#allocation2 + $0x88] sm:$0xff] %vm38, %v32
    %55 = vst [vmem:[#allocation2 + $0x90] sm:$0xff] %v24
    %56 = vst [vmem:[#allocation2 + $0x98] sm:$0xff] %v28
    %57 = vst.msk [vmem:[#allocation2 + $0xa0] sm:$0xff] %vm38, %v32
    %58 = vst [vmem:[#allocation2 + $0xa8] sm:$0xff] %v24
    %59 = vst [vmem:[#allocation2 + $0xb0] sm:$0xff] %v28
    %60 = vst.msk [vmem:[#allocation2 + $0xb8] sm:$0xff] %vm38, %v32
    %61 = vst [vmem:[#allocation2 + $0xc0] sm:$0xff] %v24
    %62 = vst [vmem:[#allocation2 + $0xc8] sm:$0xff] %v28
    %63 = vst.msk [vmem:[#allocation2 + $0xd0] sm:$0xff] %vm38, %v32
    %64 = vst [vmem:[#allocation2 + $0xd8] sm:$0xff] %v24
    %65 = vst [vmem:[#allocation2 + $0xe0] sm:$0xff] %v28
    %66 = vst.msk [vmem:[#allocation2 + $0xe8] sm:$0xff] %vm38, %v32
    %67 = vst [vmem:[#allocation2 + $0xf0] sm:$0xff] %v24
    %68 = vst [vmem:[#allocation2 + $0xf8] sm:$0xff] %v28
    %69 = vst.msk [vmem:[#allocation2 + $0x100] sm:$0xff] %vm38, %v32
    %70 = vst [vmem:[#allocation2 + $0x108] sm:$0xff] %v24
    %71 = vst [vmem:[#allocation2 + $0x110] sm:$0xff] %v28
    %72 = vst.msk [vmem:[#allocation2 + $0x118] sm:$0xff] %vm38, %v32
    %73 = vst [vmem:[#allocation2 + $0x120] sm:$0xff] %v24
    %74 = vst [vmem:[#allocation2 + $0x128] sm:$0xff] %v28
    %75 = vst.msk [vmem:[#allocation2 + $0x130] sm:$0xff] %vm38, %v32
    %76 = vst [vmem:[#allocation2 + $0x138] sm:$0xff] %v24
    %77 = vst [vmem:[#allocation2 + $0x140] sm:$0xff] %v28
    %78 = vst.msk [vmem:[#allocation2 + $0x148] sm:$0xff] %vm38, %v32
    %79 = vst [vmem:[#allocation2 + $0x150] sm:$0xff] %v24
    %80 = vst [vmem:[#allocation2 + $0x158] sm:$0xff] %v28
    %81 = vst.msk [vmem:[#allocation2 + $0x160] sm:$0xff] %vm38, %v32
    %82 = vst [vmem:[#allocation2 + $0x168] sm:$0xff] %v24
    %83 = vst [vmem:[#allocation2 + $0x170] sm:$0xff] %v28
    %84 = vst.msk [vmem:[#allocation2 + $0x178] sm:$0xff] %vm38, %v32
    %85 = vst [vmem:[#allocation2 + $0x180] sm:$0xff] %v24
    %86 = vst [vmem:[#allocation2 + $0x188] sm:$0xff] %v28
    %87 = vst.msk [vmem:[#allocation2 + $0x190] sm:$0xff] %vm38, %v32
    %88 = vst [vmem:[#allocation2 + $0x198] sm:$0xff] %v24
    %89 = vst [vmem:[#allocation2 + $0x1a0] sm:$0xff] %v28
    %90 = vst.msk [vmem:[#allocation2 + $0x1a8] sm:$0xff] %vm38, %v32
    %91 = vst [vmem:[#allocation2 + $0x1b0] sm:$0xff] %v24
    %92 = vst [vmem:[#allocation2 + $0x1b8] sm:$0xff] %v28
    %93 = vst.msk [vmem:[#allocation2 + $0x1c0] sm:$0xff] %vm38, %v32
    %94 = vst [vmem:[#allocation2 + $0x1c8] sm:$0xff] %v24
    %95 = vst [vmem:[#allocation2 + $0x1d0] sm:$0xff] %v28
    %96 = vst.msk [vmem:[#allocation2 + $0x1d8] sm:$0xff] %vm38, %v32
    %97 = vst [vmem:[#allocation2 + $0x1e0] sm:$0xff] %v24
    %98 = vst [vmem:[#allocation2 + $0x1e8] sm:$0xff] %v28
    %99 = vst.msk [vmem:[#allocation2 + $0x1f0] sm:$0xff] %vm38, %v32
    %100 = vst [vmem:[#allocation2 + $0x1f8] sm:$0xff] %v24
    %101 = vst [vmem:[#allocation2 + $0x200] sm:$0xff] %v28
    %102 = vst.msk [vmem:[#allocation2 + $0x208] sm:$0xff] %vm38, %v32
    %103 = vst [vmem:[#allocation2 + $0x210] sm:$0xff] %v24
    %104 = vst [vmem:[#allocation2 + $0x218] sm:$0xff] %v28
    %105 = vst.msk [vmem:[#allocation2 + $0x220] sm:$0xff] %vm38, %v32
    %106 = vst [vmem:[#allocation2 + $0x228] sm:$0xff] %v24
    %107 = vst [vmem:[#allocation2 + $0x230] sm:$0xff] %v28
    %108 = vst.msk [vmem:[#allocation2 + $0x238] sm:$0xff] %vm38, %v32
    %109 = vst [vmem:[#allocation2 + $0x240] sm:$0xff] %v24
    %110 = vst [vmem:[#allocation2 + $0x248] sm:$0xff] %v28
    %111 = vst.msk [vmem:[#allocation2 + $0x250] sm:$0xff] %vm38, %v32
    %112 = vst [vmem:[#allocation2 + $0x258] sm:$0xff] %v24
    %113 = vst [vmem:[#allocation2 + $0x260] sm:$0xff] %v28
    %114 = vst.msk [vmem:[#allocation2 + $0x268] sm:$0xff] %vm38, %v32
    %115 = vst [vmem:[#allocation2 + $0x270] sm:$0xff] %v24
    %116 = vst [vmem:[#allocation2 + $0x278] sm:$0xff] %v28
    %117 = vst.msk [vmem:[#allocation2 + $0x280] sm:$0xff] %vm38, %v32
    %118 = vst [vmem:[#allocation2 + $0x288] sm:$0xff] %v24
    %119 = vst [vmem:[#allocation2 + $0x290] sm:$0xff] %v28
    %120 = vst.msk [vmem:[#allocation2 + $0x298] sm:$0xff] %vm38, %v32
    %121 = vst [vmem:[#allocation2 + $0x2a0] sm:$0xff] %v24
    %122 = vst [vmem:[#allocation2 + $0x2a8] sm:$0xff] %v28
    %123 = vst.msk [vmem:[#allocation2 + $0x2b0] sm:$0xff] %vm38, %v32
    %124 = vst [vmem:[#allocation2 + $0x2b8] sm:$0xff] %v24
    %125 = vst [vmem:[#allocation2 + $0x2c0] sm:$0xff] %v28
    %126 = vst.msk [vmem:[#allocation2 + $0x2c8] sm:$0xff] %vm38, %v32
    %127 = vst [vmem:[#allocation2 + $0x2d0] sm:$0xff] %v24
    %128 = vst [vmem:[#allocation2 + $0x2d8] sm:$0xff] %v28
    %129 = vst.msk [vmem:[#allocation2 + $0x2e0] sm:$0xff] %vm38, %v32
    %130 = vst [vmem:[#allocation2 + $0x2e8] sm:$0xff] %v24
    %131 = vst [vmem:[#allocation2 + $0x2f0] sm:$0xff] %v28
    %132 = vst.msk [vmem:[#allocation2 + $0x2f8] sm:$0xff] %vm38, %v32
  $region17: #{tpu_custom_call.1} parent=0 // pred_fallthru
    _
  %v133 = vld [vmem:[#allocation2] sm:$0xff]
  %v134 = vld [vmem:[#allocation2 + $0x8] sm:$0xff]
  %v135 = vld [vmem:[#allocation2 + $0x10] sm:$0xff]
  %v136 = vld [vmem:[#allocation2 + $0x18] sm:$0xff]
  %v137 = vld [vmem:[#allocation2 + $0x20] sm:$0xff]
  %v138 = vld [vmem:[#allocation2 + $0x28] sm:$0xff]
  %v139 = vld [vmem:[#allocation2 + $0x30] sm:$0xff]
  %v140 = vld [vmem:[#allocation2 + $0x38] sm:$0xff]
  %v141 = vld [vmem:[#allocation2 + $0x40] sm:$0xff]
  %v142 = vld [vmem:[#allocation2 + $0x48] sm:$0xff]
  %v143 = vld [vmem:[#allocation2 + $0x50] sm:$0xff]
  %v144 = vld [vmem:[#allocation2 + $0x58] sm:$0xff]
  %v145 = vld [vmem:[#allocation2 + $0x60] sm:$0xff]
  %v146 = vld [vmem:[#allocation2 + $0x68] sm:$0xff]
  %v147 = vld [vmem:[#allocation2 + $0x70] sm:$0xff]
  %v148 = vld [vmem:[#allocation2 + $0x78] sm:$0xff]
  %v149 = vld [vmem:[#allocation2 + $0x80] sm:$0xff]
  %v150 = vld [vmem:[#allocation2 + $0x88] sm:$0xff]
  %v151 = vld [vmem:[#allocation2 + $0x90] sm:$0xff]
  %v152 = vld [vmem:[#allocation2 + $0x98] sm:$0xff]
  %v153 = vld [vmem:[#allocation2 + $0xa0] sm:$0xff]
  %v154 = vld [vmem:[#allocation2 + $0xa8] sm:$0xff]
  %v155 = vld [vmem:[#allocation2 + $0xb0] sm:$0xff]
  %v156 = vld [vmem:[#allocation2 + $0xb8] sm:$0xff]
  %v157 = vld [vmem:[#allocation2 + $0xc0] sm:$0xff]
  %v158 = vld [vmem:[#allocation2 + $0xc8] sm:$0xff]
  %v159 = vld [vmem:[#allocation2 + $0xd0] sm:$0xff]
  %v160 = vld [vmem:[#allocation2 + $0xd8] sm:$0xff]
  %v161 = vld [vmem:[#allocation2 + $0xe0] sm:$0xff]
  %v162 = vld [vmem:[#allocation2 + $0xe8] sm:$0xff]
  %v163 = vld [vmem:[#allocation2 + $0xf0] sm:$0xff]
  %v164 = vld [vmem:[#allocation2 + $0xf8] sm:$0xff]
  %v165 = vld [vmem:[#allocation2 + $0x100] sm:$0xff]
  %v166 = vld [vmem:[#allocation2 + $0x108] sm:$0xff]
  %v167 = vld [vmem:[#allocation2 + $0x110] sm:$0xff]
  %v168 = vld [vmem:[#allocation2 + $0x118] sm:$0xff]
  %v169 = vld [vmem:[#allocation2 + $0x120] sm:$0xff]
  %v170 = vld [vmem:[#allocation2 + $0x128] sm:$0xff]
  %v171 = vld [vmem:[#allocation2 + $0x130] sm:$0xff]
  %v172 = vld [vmem:[#allocation2 + $0x138] sm:$0xff]
  %v173 = vld [vmem:[#allocation2 + $0x140] sm:$0xff]
  %v174 = vld [vmem:[#allocation2 + $0x148] sm:$0xff]
  %v175 = vld [vmem:[#allocation2 + $0x150] sm:$0xff]
  %v176 = vld [vmem:[#allocation2 + $0x158] sm:$0xff]
  %v177 = vld [vmem:[#allocation2 + $0x160] sm:$0xff]
  %v178 = vld [vmem:[#allocation2 + $0x168] sm:$0xff]
  %v179 = vld [vmem:[#allocation2 + $0x170] sm:$0xff]
  %v180 = vld [vmem:[#allocation2 + $0x178] sm:$0xff]
  %v181 = vld [vmem:[#allocation2 + $0x180] sm:$0xff]
  %v182 = vld [vmem:[#allocation2 + $0x188] sm:$0xff]
  %v183 = vld [vmem:[#allocation2 + $0x190] sm:$0xff]
  %v184 = vld [vmem:[#allocation2 + $0x198] sm:$0xff]
  %v185 = vld [vmem:[#allocation2 + $0x1a0] sm:$0xff]
  %v186 = vld [vmem:[#allocation2 + $0x1a8] sm:$0xff]
  %v187 = vld [vmem:[#allocation2 + $0x1b0] sm:$0xff]
  %v188 = vld [vmem:[#allocation2 + $0x1b8] sm:$0xff]
  %v189 = vld [vmem:[#allocation2 + $0x1c0] sm:$0xff]
  %v190 = vld [vmem:[#allocation2 + $0x1c8] sm:$0xff]
  %v191 = vld [vmem:[#allocation2 + $0x1d0] sm:$0xff]
  %v192 = vld [vmem:[#allocation2 + $0x1d8] sm:$0xff]
  %v193 = vld [vmem:[#allocation2 + $0x1e0] sm:$0xff]
  %v194 = vld [vmem:[#allocation2 + $0x1e8] sm:$0xff]
  %v195 = vld [vmem:[#allocation2 + $0x1f0] sm:$0xff]
  %v196 = vld [vmem:[#allocation2 + $0x1f8] sm:$0xff]
  %v197 = vld [vmem:[#allocation2 + $0x200] sm:$0xff]
  %v198 = vld [vmem:[#allocation2 + $0x208] sm:$0xff]
  %v199 = vld [vmem:[#allocation2 + $0x210] sm:$0xff]
  %v200 = vld [vmem:[#allocation2 + $0x218] sm:$0xff]
  %v201 = vld [vmem:[#allocation2 + $0x220] sm:$0xff]
  %v202 = vld [vmem:[#allocation2 + $0x228] sm:$0xff]
  %v203 = vld [vmem:[#allocation2 + $0x230] sm:$0xff]
  %v204 = vld [vmem:[#allocation2 + $0x238] sm:$0xff]
  %v205 = vld [vmem:[#allocation2 + $0x240] sm:$0xff]
  %v206 = vld [vmem:[#allocation2 + $0x248] sm:$0xff]
  %v207 = vld [vmem:[#allocation2 + $0x250] sm:$0xff]
  %v208 = vld [vmem:[#allocation2 + $0x258] sm:$0xff]
  %v209 = vld [vmem:[#allocation2 + $0x260] sm:$0xff]
  %v210 = vld [vmem:[#allocation2 + $0x268] sm:$0xff]
  %v211 = vld [vmem:[#allocation2 + $0x270] sm:$0xff]
  %v212 = vld [vmem:[#allocation2 + $0x278] sm:$0xff]
  %v213 = vld [vmem:[#allocation2 + $0x280] sm:$0xff]
  %v214 = vld [vmem:[#allocation2 + $0x288] sm:$0xff]
  %v215 = vld [vmem:[#allocation2 + $0x290] sm:$0xff]
  %v216 = vld [vmem:[#allocation2 + $0x298] sm:$0xff]
  %v217 = vld [vmem:[#allocation2 + $0x2a0] sm:$0xff]
  %v218 = vld [vmem:[#allocation2 + $0x2a8] sm:$0xff]
  %v219 = vld [vmem:[#allocation2 + $0x2b0] sm:$0xff]
  %v220 = vld [vmem:[#allocation2 + $0x2b8] sm:$0xff]
  %v221 = vld [vmem:[#allocation2 + $0x2c0] sm:$0xff]
  %v222 = vld [vmem:[#allocation2 + $0x2c8] sm:$0xff]
  %v223 = vld [vmem:[#allocation2 + $0x2d0] sm:$0xff]
  %v224 = vld [vmem:[#allocation2 + $0x2d8] sm:$0xff]
  %v225 = vld [vmem:[#allocation2 + $0x2e0] sm:$0xff]
  %v226 = vld [vmem:[#allocation2 + $0x2e8] sm:$0xff]
  %v227 = vld [vmem:[#allocation2 + $0x2f0] sm:$0xff]
  %v228 = vld [vmem:[#allocation2 + $0x2f8] sm:$0xff]
  %v229 = vld [vmem:[%s0] sm:$0xf]
  %v230 = vld [vmem:[%s0 + $0x4] sm:$0xf]
  %v231 = vld [vmem:[%s0 + $0x8] sm:$0xf]
  %v232 = vld [vmem:[%s0 + $0xc] sm:$0xf]
  %v233 = vld [vmem:[%s0 + $0x10] sm:$0xf]
  %v234 = vld [vmem:[%s0 + $0x14] sm:$0xf]
  %v235 = vld [vmem:[%s0 + $0x18] sm:$0xf]
  %v236 = vld [vmem:[%s0 + $0x1c] sm:$0xf]
  %v237 = vld [vmem:[%s0 + $0x20] sm:$0xf]
  %v238 = vld [vmem:[%s0 + $0x24] sm:$0xf]
  %v239 = vld [vmem:[%s0 + $0x28] sm:$0xf]
  %v240 = vld [vmem:[%s0 + $0x2c] sm:$0xf]
  %v241 = vld [vmem:[%s0 + $0x30] sm:$0xf]
  %v242 = vld [vmem:[%s0 + $0x34] sm:$0xf]
  %v243 = vld [vmem:[%s0 + $0x38] sm:$0xf]
  %v244 = vld [vmem:[%s0 + $0x3c] sm:$0xf]
  %v245 = vld [vmem:[%s0 + $0x40] sm:$0xf]
  %v246 = vld [vmem:[%s0 + $0x44] sm:$0xf]
  %v247 = vld [vmem:[%s0 + $0x48] sm:$0xf]
  %v248 = vld [vmem:[%s0 + $0x4c] sm:$0xf]
  %v249 = vld [vmem:[%s0 + $0x50] sm:$0xf]
  %v250 = vld [vmem:[%s0 + $0x54] sm:$0xf]
  %v251 = vld [vmem:[%s0 + $0x58] sm:$0xf]
  %v252 = vld [vmem:[%s0 + $0x5c] sm:$0xf]
  %v253 = vld [vmem:[%s0 + $0x60] sm:$0xf]
  %v254 = vld [vmem:[%s0 + $0x64] sm:$0xf]
  %v255 = vld [vmem:[%s0 + $0x68] sm:$0xf]
  %v256 = vld [vmem:[%s0 + $0x6c] sm:$0xf]
  %v257 = vld [vmem:[%s0 + $0x70] sm:$0xf]
  %v258 = vld [vmem:[%s0 + $0x74] sm:$0xf]
  %v259 = vld [vmem:[%s0 + $0x78] sm:$0xf]
  %v260 = vld [vmem:[%s0 + $0x7c] sm:$0xf]
  %v261 = vld [vmem:[%s1] sm:$0xff]
  %v262 = vld [vmem:[%s1 + $0x8] sm:$0xf]
  %v263 = vld [vmem:[%s1 + $0xc] sm:$0xff]
  %v264 = vld [vmem:[%s1 + $0x14] sm:$0xf]
  %v265 = vld [vmem:[%s1 + $0x18] sm:$0xff]
  %v266 = vld [vmem:[%s1 + $0x20] sm:$0xf]
  %v267 = vld [vmem:[%s1 + $0x24] sm:$0xff]
  %v268 = vld [vmem:[%s1 + $0x2c] sm:$0xf]
  %v269 = vld [vmem:[%s1 + $0x30] sm:$0x33]
  %v270 = vld [vmem:[%s1 + $0x38] sm:$0x3]
  %v303 = vunpack.c.l.b16 %v229
  %v304 = vunpack.c.l.b16 %v230
  %v305 = vunpack.c.l.b16 %v231
  %v306 = vunpack.c.l.b16 %v232
  %v307 = vunpack.c.l.b16 %v233
  %v308 = vunpack.c.l.b16 %v234
  %v309 = vunpack.c.l.b16 %v235
  %v310 = vunpack.c.l.b16 %v236
  %v311 = vunpack.c.l.b16 %v237
  %v312 = vunpack.c.l.b16 %v238
  %v313 = vunpack.c.l.b16 %v239
  %v314 = vunpack.c.l.b16 %v240
  %v315 = vunpack.c.l.b16 %v241
  %v316 = vunpack.c.l.b16 %v242
  %v317 = vunpack.c.l.b16 %v243
  %v318 = vunpack.c.l.b16 %v244
  %v319 = vunpack.c.l.b16 %v245
  %v320 = vunpack.c.l.b16 %v246
  %v321 = vunpack.c.l.b16 %v247
  %v322 = vunpack.c.l.b16 %v248
  %v323 = vunpack.c.l.b16 %v249
  %v324 = vunpack.c.l.b16 %v250
  %v325 = vunpack.c.l.b16 %v251
  %v326 = vunpack.c.l.b16 %v252
  %v327 = vunpack.c.l.b16 %v253
  %v328 = vunpack.c.l.b16 %v254
  %v329 = vunpack.c.l.b16 %v255
  %v330 = vunpack.c.l.b16 %v256
  %v331 = vunpack.c.l.b16 %v257
  %v332 = vunpack.c.l.b16 %v258
  %v333 = vunpack.c.l.b16 %v259
  %v334 = vunpack.c.l.b16 %v260
  %v335 = vpack.c.b16 %v304, %v303
  %v336 = vpack.c.b16 %v306, %v305
  %v337 = vpack.c.b16 %v308, %v307
  %v338 = vpack.c.b16 %v310, %v309
  %v339 = vpack.c.b16 %v312, %v311
  %v340 = vpack.c.b16 %v314, %v313
  %v341 = vpack.c.b16 %v316, %v315
  %v342 = vpack.c.b16 %v318, %v317
  %v343 = vpack.c.b16 %v320, %v319
  %v344 = vpack.c.b16 %v322, %v321
  %v345 = vpack.c.b16 %v324, %v323
  %v346 = vpack.c.b16 %v326, %v325
  %v347 = vpack.c.b16 %v328, %v327
  %v348 = vpack.c.b16 %v330, %v329
  %v349 = vpack.c.b16 %v332, %v331
  %v350 = vpack.c.b16 %v334, %v333
  %v361 = vunpack.c.l.b16 %v261
  %v362 = vunpack.c.h.b16 %v261
  %v363 = vunpack.c.l.b16 %v262
  %v364 = vunpack.c.l.b16 %v263
  %v365 = vunpack.c.h.b16 %v263
  %v366 = vunpack.c.l.b16 %v264
  %v367 = vunpack.c.l.b16 %v265
  %v368 = vunpack.c.h.b16 %v265
  %v369 = vunpack.c.l.b16 %v266
  %v370 = vunpack.c.l.b16 %v267
  %v371 = vunpack.c.h.b16 %v267
  %v372 = vunpack.c.l.b16 %v268
  %v373 = vunpack.c.l.b16 %v269
  %v374 = vunpack.c.h.b16 %v269
  %v375 = vunpack.c.l.b16 %v270
  %v376 = vpack.c.b16 %v364, %v361
  %v377 = vpack.c.b16 %v365, %v362
  %v378 = vpack.c.b16 %v366, %v363
  %v379 = vpack.c.b16 %v370, %v367
  %v380 = vpack.c.b16 %v371, %v368
  %v381 = vpack.c.b16 %v372, %v369
  %v382 = vpack.c.b16 %v373, %v373
  %v383 = vpack.c.b16 %v374, %v374
  %v384 = vpack.c.b16 %v375, %v375
  %vm391 = vcmask 293888
  %v393 = vsel %vm391, %v335, 0
  %v396 = vsel %vm391, %v336, 0
  %v399 = vsel %vm391, %v337, 0
  %v402 = vsel %vm391, %v338, 0
  %v405 = vsel %vm391, %v339, 0
  %v408 = vsel %vm391, %v340, 0
  %v411 = vsel %vm391, %v341, 0
  %v414 = vsel %vm391, %v342, 0
  %v417 = vsel %vm391, %v343, 0
  %v420 = vsel %vm391, %v344, 0
  %v423 = vsel %vm391, %v345, 0
  %v426 = vsel %vm391, %v346, 0
  %v429 = vsel %vm391, %v347, 0
  %v432 = vsel %vm391, %v348, 0
  %v435 = vsel %vm391, %v349, 0
  %v438 = vsel %vm391, %v350, 0
  %vm440 = vcmask 1041408
  %v442 = vsel %vm440, %v382, 0
  %v445 = vsel %vm440, %v383, 0
  %v448 = vsel %vm440, %v384, 0
  %450 = vmatprep.subr.bf16.mxu0 %v377
  %451 = vmatpush1.bf16.msra.mxu0 %v376
  %452 = vmatprep.subr.bf16.mxu0 %v380
  %453 = vmatpush1.bf16.msra.mxu0 %v379
  %454 = vmatprep.subr.bf16.mxu0 %v445
  %455 = vmatpush1.bf16.msra.mxu0 %v442
  %456 = vmatprep.subr.bf16.mxu0 0
  %457 = vmatpush1.bf16.msra.mxu0 0
  %458 = vmatprep.subr.bf16.mxu0 0
  %459 = vmatpush1.bf16.msra.mxu0 0
  %460 = vmatprep.subr.bf16.mxu0 0
  %461 = vmatpush1.bf16.msra.mxu0 0
  %462 = vmatprep.subr.bf16.mxu0 0
  %463 = vmatpush1.bf16.msra.mxu0 0
  %464 = vmatprep.subr.bf16.mxu0 0
  %465 = vmatpush1.bf16.msra.mxu0 0
  %466 = vmatprep.subr.bf16.mxu0 0
  %467 = vmatpush1.bf16.msra.mxu0 0
  %468 = vmatprep.subr.bf16.mxu0 0
  %469 = vmatpush1.bf16.msra.mxu0 0
  %470 = vmatprep.subr.bf16.mxu0 0
  %471 = vmatpush1.bf16.msra.mxu0 0
  %472 = vmatprep.subr.bf16.mxu0 0
  %473 = vmatpush1.bf16.msra.mxu0 0
  %474 = vmatprep.subr.bf16.mxu0 0
  %475 = vmatpush1.bf16.msra.mxu0 0
  %476 = vmatprep.subr.bf16.mxu0 0
  %477 = vmatpush1.bf16.msra.mxu0 0
  %478 = vmatprep.subr.bf16.mxu0 0
  %479 = vmatpush1.bf16.msra.mxu0 0
  %480 = vmatprep.subr.bf16.mxu0 0
  %481 = vmatpush1.bf16.msra.mxu0 0
  %482 = vmatprep.mubr.bf16.mxu0 0
  %483 = vmatmul.mubr.bf16.gmra.mrb[0].mxu0 %v393
  %v484 = vpop.f32.mrb[0].mxu0
  %v485 = vadd.f32 0.0, %v484
  %v486 = vpop.f32.mrb[0].mxu0
  %v487 = vadd.f32 0.0, %v486
  %v488 = vpop.f32.mrb[0].mxu0
  %v489 = vadd.f32 0.0, %v488
  %v490 = vpop.f32.mrb[0].mxu0
  %v491 = vadd.f32 0.0, %v490
  %492 = vmatprep.mubr.bf16.mxu0 0
  %493 = vmatmul.mubr.bf16.gmra.mrb[0].mxu0 %v396
  %v494 = vpop.f32.mrb[0].mxu0
  %v495 = vadd.f32 0.0, %v494
  %v496 = vpop.f32.mrb[0].mxu0
  %v497 = vadd.f32 0.0, %v496
  %v498 = vpop.f32.mrb[0].mxu0
  %v499 = vadd.f32 0.0, %v498
  %v500 = vpop.f32.mrb[0].mxu0
  %v501 = vadd.f32 0.0, %v500
  %502 = vmatprep.mubr.bf16.mxu0 0
  %503 = vmatmul.mubr.bf16.gmra.mrb[0].mxu0 %v399
  %v504 = vpop.f32.mrb[0].mxu0
  %v505 = vadd.f32 0.0, %v504
  %v506 = vpop.f32.mrb[0].mxu0
  %v507 = vadd.f32 0.0, %v506
  %v508 = vpop.f32.mrb[0].mxu0
  %v509 = vadd.f32 0.0, %v508
  %v510 = vpop.f32.mrb[0].mxu0
  %v511 = vadd.f32 0.0, %v510
  %512 = vmatprep.mubr.bf16.mxu0 0
  %513 = vmatmul.mubr.bf16.gmra.mrb[0].mxu0 %v402
  %v514 = vpop.f32.mrb[0].mxu0
  %v515 = vadd.f32 0.0, %v514
  %v516 = vpop.f32.mrb[0].mxu0
  %v517 = vadd.f32 0.0, %v516
  %v518 = vpop.f32.mrb[0].mxu0
  %v519 = vadd.f32 0.0, %v518
  %v520 = vpop.f32.mrb[0].mxu0
  %v521 = vadd.f32 0.0, %v520
  %522 = vmatprep.mubr.bf16.mxu0 0
  %523 = vmatmul.mubr.bf16.gmra.mrb[0].mxu0 %v405
  %v524 = vpop.f32.mrb[0].mxu0
  %v525 = vadd.f32 0.0, %v524
  %v526 = vpop.f32.mrb[0].mxu0
  %v527 = vadd.f32 0.0, %v526
  %v528 = vpop.f32.mrb[0].mxu0
  %v529 = vadd.f32 0.0, %v528
  %v530 = vpop.f32.mrb[0].mxu0
  %v531 = vadd.f32 0.0, %v530
  %532 = vmatprep.mubr.bf16.mxu0 0
  %533 = vmatmul.mubr.bf16.gmra.mrb[0].mxu0 %v408
  %v534 = vpop.f32.mrb[0].mxu0
  %v535 = vadd.f32 0.0, %v534
  %v536 = vpop.f32.mrb[0].mxu0
  %v537 = vadd.f32 0.0, %v536
  %v538 = vpop.f32.mrb[0].mxu0
  %v539 = vadd.f32 0.0, %v538
  %v540 = vpop.f32.mrb[0].mxu0
  %v541 = vadd.f32 0.0, %v540
  %542 = vmatprep.mubr.bf16.mxu0 0
  %543 = vmatmul.mubr.bf16.gmra.mrb[0].mxu0 %v411
  %v544 = vpop.f32.mrb[0].mxu0
  %v545 = vadd.f32 0.0, %v544
  %v546 = vpop.f32.mrb[0].mxu0
  %v547 = vadd.f32 0.0, %v546
  %v548 = vpop.f32.mrb[0].mxu0
  %v549 = vadd.f32 0.0, %v548
  %v550 = vpop.f32.mrb[0].mxu0
  %v551 = vadd.f32 0.0, %v550
  %552 = vmatprep.mubr.bf16.mxu0 0
  %553 = vmatmul.mubr.bf16.gmra.mrb[0].mxu0 %v414
  %v554 = vpop.f32.mrb[0].mxu0
  %v555 = vadd.f32 0.0, %v554
  %v556 = vpop.f32.mrb[0].mxu0
  %v557 = vadd.f32 0.0, %v556
  %v558 = vpop.f32.mrb[0].mxu0
  %v559 = vadd.f32 0.0, %v558
  %v560 = vpop.f32.mrb[0].mxu0
  %v561 = vadd.f32 0.0, %v560
  %562 = vmatprep.mubr.bf16.mxu0 0
  %563 = vmatmul.mubr.bf16.gmra.mrb[0].mxu0 %v417
  %v564 = vpop.f32.mrb[0].mxu0
  %v565 = vadd.f32 0.0, %v564
  %v566 = vpop.f32.mrb[0].mxu0
  %v567 = vadd.f32 0.0, %v566
  %v568 = vpop.f32.mrb[0].mxu0
  %v569 = vadd.f32 0.0, %v568
  %v570 = vpop.f32.mrb[0].mxu0
  %v571 = vadd.f32 0.0, %v570
  %572 = vmatprep.mubr.bf16.mxu0 0
  %573 = vmatmul.mubr.bf16.gmra.mrb[0].mxu0 %v420
  %v574 = vpop.f32.mrb[0].mxu0
  %v575 = vadd.f32 0.0, %v574
  %v576 = vpop.f32.mrb[0].mxu0
  %v577 = vadd.f32 0.0, %v576
  %v578 = vpop.f32.mrb[0].mxu0
  %v579 = vadd.f32 0.0, %v578
  %v580 = vpop.f32.mrb[0].mxu0
  %v581 = vadd.f32 0.0, %v580
  %582 = vmatprep.mubr.bf16.mxu0 0
  %583 = vmatmul.mubr.bf16.gmra.mrb[0].mxu0 %v423
  %v584 = vpop.f32.mrb[0].mxu0
  %v585 = vadd.f32 0.0, %v584
  %v586 = vpop.f32.mrb[0].mxu0
  %v587 = vadd.f32 0.0, %v586
  %v588 = vpop.f32.mrb[0].mxu0
  %v589 = vadd.f32 0.0, %v588
  %v590 = vpop.f32.mrb[0].mxu0
  %v591 = vadd.f32 0.0, %v590
  %592 = vmatprep.mubr.bf16.mxu0 0
  %593 = vmatmul.mubr.bf16.gmra.mrb[0].mxu0 %v426
  %v594 = vpop.f32.mrb[0].mxu0
  %v595 = vadd.f32 0.0, %v594
  %v596 = vpop.f32.mrb[0].mxu0
  %v597 = vadd.f32 0.0, %v596
  %v598 = vpop.f32.mrb[0].mxu0
  %v599 = vadd.f32 0.0, %v598
  %v600 = vpop.f32.mrb[0].mxu0
  %v601 = vadd.f32 0.0, %v600
  %602 = vmatprep.mubr.bf16.mxu0 0
  %603 = vmatmul.mubr.bf16.gmra.mrb[0].mxu0 %v429
  %v604 = vpop.f32.mrb[0].mxu0
  %v605 = vadd.f32 0.0, %v604
  %v606 = vpop.f32.mrb[0].mxu0
  %v607 = vadd.f32 0.0, %v606
  %v608 = vpop.f32.mrb[0].mxu0
  %v609 = vadd.f32 0.0, %v608
  %v610 = vpop.f32.mrb[0].mxu0
  %v611 = vadd.f32 0.0, %v610
  %612 = vmatprep.mubr.bf16.mxu0 0
  %613 = vmatmul.mubr.bf16.gmra.mrb[0].mxu0 %v432
  %v614 = vpop.f32.mrb[0].mxu0
  %v615 = vadd.f32 0.0, %v614
  %v616 = vpop.f32.mrb[0].mxu0
  %v617 = vadd.f32 0.0, %v616
  %v618 = vpop.f32.mrb[0].mxu0
  %v619 = vadd.f32 0.0, %v618
  %v620 = vpop.f32.mrb[0].mxu0
  %v621 = vadd.f32 0.0, %v620
  %622 = vmatprep.mubr.bf16.mxu0 0
  %623 = vmatmul.mubr.bf16.gmra.mrb[0].mxu0 %v435
  %v624 = vpop.f32.mrb[0].mxu0
  %v625 = vadd.f32 0.0, %v624
  %v626 = vpop.f32.mrb[0].mxu0
  %v627 = vadd.f32 0.0, %v626
  %v628 = vpop.f32.mrb[0].mxu0
  %v629 = vadd.f32 0.0, %v628
  %v630 = vpop.f32.mrb[0].mxu0
  %v631 = vadd.f32 0.0, %v630
  %632 = vmatprep.mubr.bf16.mxu0 0
  %633 = vmatmul.mubr.bf16.gmra.mrb[0].mxu0 %v438
  %v634 = vpop.f32.mrb[0].mxu0
  %v635 = vadd.f32 0.0, %v634
  %v636 = vpop.f32.mrb[0].mxu0
  %v637 = vadd.f32 0.0, %v636
  %v638 = vpop.f32.mrb[0].mxu0
  %v639 = vadd.f32 0.0, %v638
  %v640 = vpop.f32.mrb[0].mxu0
  %v641 = vadd.f32 0.0, %v640
  %642 = vdwg.mxu0
  %643 = vmatprep.subr.bf16.mxu0 0
  %644 = vmatpush1.bf16.msra.mxu0 %v378
  %645 = vmatprep.subr.bf16.mxu0 0
  %646 = vmatpush1.bf16.msra.mxu0 %v381
  %647 = vmatprep.subr.bf16.mxu0 0
  %648 = vmatpush1.bf16.msra.mxu0 %v448
  %649 = vmatprep.subr.bf16.mxu0 0
  %650 = vmatpush1.bf16.msra.mxu0 0
  %651 = vmatprep.subr.bf16.mxu0 0
  %652 = vmatpush1.bf16.msra.mxu0 0
  %653 = vmatprep.subr.bf16.mxu0 0
  %654 = vmatpush1.bf16.msra.mxu0 0
  %655 = vmatprep.subr.bf16.mxu0 0
  %656 = vmatpush1.bf16.msra.mxu0 0
  %657 = vmatprep.subr.bf16.mxu0 0
  %658 = vmatpush1.bf16.msra.mxu0 0
  %659 = vmatprep.subr.bf16.mxu0 0
  %660 = vmatpush1.bf16.msra.mxu0 0
  %661 = vmatprep.subr.bf16.mxu0 0
  %662 = vmatpush1.bf16.msra.mxu0 0
  %663 = vmatprep.subr.bf16.mxu0 0
  %664 = vmatpush1.bf16.msra.mxu0 0
  %665 = vmatprep.subr.bf16.mxu0 0
  %666 = vmatpush1.bf16.msra.mxu0 0
  %667 = vmatprep.subr.bf16.mxu0 0
  %668 = vmatpush1.bf16.msra.mxu0 0
  %669 = vmatprep.subr.bf16.mxu0 0
  %670 = vmatpush1.bf16.msra.mxu0 0
  %671 = vmatprep.subr.bf16.mxu0 0
  %672 = vmatpush1.bf16.msra.mxu0 0
  %673 = vmatprep.subr.bf16.mxu0 0
  %674 = vmatpush1.bf16.msra.mxu0 0
  %675 = vmatprep.mubr.bf16.mxu0 0
  %676 = vmatmul.mubr.bf16.gmra.mrb[0].mxu0 %v393
  %v677 = vpop.f32.mrb[0].mxu0
  %v678 = vadd.f32 0.0, %v677
  %v679 = vpop.f32.mrb[0].mxu0
  %v680 = vpop.f32.mrb[0].mxu0
  %v681 = vadd.f32 0.0, %v680
  %v682 = vpop.f32.mrb[0].mxu0
  %683 = vmatprep.mubr.bf16.mxu0 0
  %684 = vmatmul.mubr.bf16.gmra.mrb[0].mxu0 %v396
  %v685 = vpop.f32.mrb[0].mxu0
  %v686 = vadd.f32 0.0, %v685
  %v687 = vpop.f32.mrb[0].mxu0
  %v688 = vpop.f32.mrb[0].mxu0
  %v689 = vadd.f32 0.0, %v688
  %v690 = vpop.f32.mrb[0].mxu0
  %691 = vmatprep.mubr.bf16.mxu0 0
  %692 = vmatmul.mubr.bf16.gmra.mrb[0].mxu0 %v399
  %v693 = vpop.f32.mrb[0].mxu0
  %v694 = vadd.f32 0.0, %v693
  %v695 = vpop.f32.mrb[0].mxu0
  %v696 = vpop.f32.mrb[0].mxu0
  %v697 = vadd.f32 0.0, %v696
  %v698 = vpop.f32.mrb[0].mxu0
  %699 = vmatprep.mubr.bf16.mxu0 0
  %700 = vmatmul.mubr.bf16.gmra.mrb[0].mxu0 %v402
  %v701 = vpop.f32.mrb[0].mxu0
  %v702 = vadd.f32 0.0, %v701
  %v703 = vpop.f32.mrb[0].mxu0
  %v704 = vpop.f32.mrb[0].mxu0
  %v705 = vadd.f32 0.0, %v704
  %v706 = vpop.f32.mrb[0].mxu0
  %707 = vmatprep.mubr.bf16.mxu0 0
  %708 = vmatmul.mubr.bf16.gmra.mrb[0].mxu0 %v405
  %v709 = vpop.f32.mrb[0].mxu0
  %v710 = vadd.f32 0.0, %v709
  %v711 = vpop.f32.mrb[0].mxu0
  %v712 = vpop.f32.mrb[0].mxu0
  %v713 = vadd.f32 0.0, %v712
  %v714 = vpop.f32.mrb[0].mxu0
  %715 = vmatprep.mubr.bf16.mxu0 0
  %716 = vmatmul.mubr.bf16.gmra.mrb[0].mxu0 %v408
  %v717 = vpop.f32.mrb[0].mxu0
  %v718 = vadd.f32 0.0, %v717
  %v719 = vpop.f32.mrb[0].mxu0
  %v720 = vpop.f32.mrb[0].mxu0
  %v721 = vadd.f32 0.0, %v720
  %v722 = vpop.f32.mrb[0].mxu0
  %723 = vmatprep.mubr.bf16.mxu0 0
  %724 = vmatmul.mubr.bf16.gmra.mrb[0].mxu0 %v411
  %v725 = vpop.f32.mrb[0].mxu0
  %v726 = vadd.f32 0.0, %v725
  %v727 = vpop.f32.mrb[0].mxu0
  %v728 = vpop.f32.mrb[0].mxu0
  %v729 = vadd.f32 0.0, %v728
  %v730 = vpop.f32.mrb[0].mxu0
  %731 = vmatprep.mubr.bf16.mxu0 0
  %732 = vmatmul.mubr.bf16.gmra.mrb[0].mxu0 %v414
  %v733 = vpop.f32.mrb[0].mxu0
  %v734 = vadd.f32 0.0, %v733
  %v735 = vpop.f32.mrb[0].mxu0
  %v736 = vpop.f32.mrb[0].mxu0
  %v737 = vadd.f32 0.0, %v736
  %v738 = vpop.f32.mrb[0].mxu0
  %739 = vmatprep.mubr.bf16.mxu0 0
  %740 = vmatmul.mubr.bf16.gmra.mrb[0].mxu0 %v417
  %v741 = vpop.f32.mrb[0].mxu0
  %v742 = vadd.f32 0.0, %v741
  %v743 = vpop.f32.mrb[0].mxu0
  %v744 = vpop.f32.mrb[0].mxu0
  %v745 = vadd.f32 0.0, %v744
  %v746 = vpop.f32.mrb[0].mxu0
  %747 = vmatprep.mubr.bf16.mxu0 0
  %748 = vmatmul.mubr.bf16.gmra.mrb[0].mxu0 %v420
  %v749 = vpop.f32.mrb[0].mxu0
  %v750 = vadd.f32 0.0, %v749
  %v751 = vpop.f32.mrb[0].mxu0
  %v752 = vpop.f32.mrb[0].mxu0
  %v753 = vadd.f32 0.0, %v752
  %v754 = vpop.f32.mrb[0].mxu0
  %755 = vmatprep.mubr.bf16.mxu0 0
  %756 = vmatmul.mubr.bf16.gmra.mrb[0].mxu0 %v423
  %v757 = vpop.f32.mrb[0].mxu0
  %v758 = vadd.f32 0.0, %v757
  %v759 = vpop.f32.mrb[0].mxu0
  %v760 = vpop.f32.mrb[0].mxu0
  %v761 = vadd.f32 0.0, %v760
  %v762 = vpop.f32.mrb[0].mxu0
  %763 = vmatprep.mubr.bf16.mxu0 0
  %764 = vmatmul.mubr.bf16.gmra.mrb[0].mxu0 %v426
  %v765 = vpop.f32.mrb[0].mxu0
  %v766 = vadd.f32 0.0, %v765
  %v767 = vpop.f32.mrb[0].mxu0
  %v768 = vpop.f32.mrb[0].mxu0
  %v769 = vadd.f32 0.0, %v768
  %v770 = vpop.f32.mrb[0].mxu0
  %771 = vmatprep.mubr.bf16.mxu0 0
  %772 = vmatmul.mubr.bf16.gmra.mrb[0].mxu0 %v429
  %v773 = vpop.f32.mrb[0].mxu0
  %v774 = vadd.f32 0.0, %v773
  %v775 = vpop.f32.mrb[0].mxu0
  %v776 = vpop.f32.mrb[0].mxu0
  %v777 = vadd.f32 0.0, %v776
  %v778 = vpop.f32.mrb[0].mxu0
  %779 = vmatprep.mubr.bf16.mxu0 0
  %780 = vmatmul.mubr.bf16.gmra.mrb[0].mxu0 %v432
  %v781 = vpop.f32.mrb[0].mxu0
  %v782 = vadd.f32 0.0, %v781
  %v783 = vpop.f32.mrb[0].mxu0
  %v784 = vpop.f32.mrb[0].mxu0
  %v785 = vadd.f32 0.0, %v784
  %v786 = vpop.f32.mrb[0].mxu0
  %787 = vmatprep.mubr.bf16.mxu0 0
  %788 = vmatmul.mubr.bf16.gmra.mrb[0].mxu0 %v435
  %v789 = vpop.f32.mrb[0].mxu0
  %v790 = vadd.f32 0.0, %v789
  %v791 = vpop.f32.mrb[0].mxu0
  %v792 = vpop.f32.mrb[0].mxu0
  %v793 = vadd.f32 0.0, %v792
  %v794 = vpop.f32.mrb[0].mxu0
  %795 = vmatprep.mubr.bf16.mxu0 0
  %796 = vmatmul.mubr.bf16.gmra.mrb[0].mxu0 %v438
  %v797 = vpop.f32.mrb[0].mxu0
  %v798 = vadd.f32 0.0, %v797
  %v799 = vpop.f32.mrb[0].mxu0
  %v800 = vpop.f32.mrb[0].mxu0
  %v801 = vadd.f32 0.0, %v800
  %v802 = vpop.f32.mrb[0].mxu0
  %803 = vdwg.mxu0
  %v804 = vadd.f32 %v133, %v485
  %v805 = vadd.f32 %v134, %v487
  %v806 = vadd.f32 %v135, %v678
  %v807 = vadd.f32 %v136, %v489
  %v808 = vadd.f32 %v137, %v491
  %v809 = vadd.f32 %v138, %v681
  %v810 = vadd.f32 %v139, %v495
  %v811 = vadd.f32 %v140, %v497
  %v812 = vadd.f32 %v141, %v686
  %v813 = vadd.f32 %v142, %v499
  %v814 = vadd.f32 %v143, %v501
  %v815 = vadd.f32 %v144, %v689
  %v816 = vadd.f32 %v145, %v505
  %v817 = vadd.f32 %v146, %v507
  %v818 = vadd.f32 %v147, %v694
  %v819 = vadd.f32 %v148, %v509
  %v820 = vadd.f32 %v149, %v511
  %v821 = vadd.f32 %v150, %v697
  %v822 = vadd.f32 %v151, %v515
  %v823 = vadd.f32 %v152, %v517
  %v824 = vadd.f32 %v153, %v702
  %v825 = vadd.f32 %v154, %v519
  %v826 = vadd.f32 %v155, %v521
  %v827 = vadd.f32 %v156, %v705
  %v828 = vadd.f32 %v157, %v525
  %v829 = vadd.f32 %v158, %v527
  %v830 = vadd.f32 %v159, %v710
  %v831 = vadd.f32 %v160, %v529
  %v832 = vadd.f32 %v161, %v531
  %v833 = vadd.f32 %v162, %v713
  %v834 = vadd.f32 %v163, %v535
  %v835 = vadd.f32 %v164, %v537
  %v836 = vadd.f32 %v165, %v718
  %v837 = vadd.f32 %v166, %v539
  %v838 = vadd.f32 %v167, %v541
  %v839 = vadd.f32 %v168, %v721
  %v840 = vadd.f32 %v169, %v545
  %v841 = vadd.f32 %v170, %v547
  %v842 = vadd.f32 %v171, %v726
  %v843 = vadd.f32 %v172, %v549
  %v844 = vadd.f32 %v173, %v551
  %v845 = vadd.f32 %v174, %v729
  %v846 = vadd.f32 %v175, %v555
  %v847 = vadd.f32 %v176, %v557
  %v848 = vadd.f32 %v177, %v734
  %v849 = vadd.f32 %v178, %v559
  %v850 = vadd.f32 %v179, %v561
  %v851 = vadd.f32 %v180, %v737
  %v852 = vadd.f32 %v181, %v565
  %v853 = vadd.f32 %v182, %v567
  %v854 = vadd.f32 %v183, %v742
  %v855 = vadd.f32 %v184, %v569
  %v856 = vadd.f32 %v185, %v571
  %v857 = vadd.f32 %v186, %v745
  %v858 = vadd.f32 %v187, %v575
  %v859 = vadd.f32 %v188, %v577
  %v860 = vadd.f32 %v189, %v750
  %v861 = vadd.f32 %v190, %v579
  %v862 = vadd.f32 %v191, %v581
  %v863 = vadd.f32 %v192, %v753
  %v864 = vadd.f32 %v193, %v585
  %v865 = vadd.f32 %v194, %v587
  %v866 = vadd.f32 %v195, %v758
  %v867 = vadd.f32 %v196, %v589
  %v868 = vadd.f32 %v197, %v591
  %v869 = vadd.f32 %v198, %v761
  %v870 = vadd.f32 %v199, %v595
  %v871 = vadd.f32 %v200, %v597
  %v872 = vadd.f32 %v201, %v766
  %v873 = vadd.f32 %v202, %v599
  %v874 = vadd.f32 %v203, %v601
  %v875 = vadd.f32 %v204, %v769
  %v876 = vadd.f32 %v205, %v605
  %v877 = vadd.f32 %v206, %v607
  %v878 = vadd.f32 %v207, %v774
  %v879 = vadd.f32 %v208, %v609
  %v880 = vadd.f32 %v209, %v611
  %v881 = vadd.f32 %v210, %v777
  %v882 = vadd.f32 %v211, %v615
  %v883 = vadd.f32 %v212, %v617
  %v884 = vadd.f32 %v213, %v782
  %v885 = vadd.f32 %v214, %v619
  %v886 = vadd.f32 %v215, %v621
  %v887 = vadd.f32 %v216, %v785
  %v888 = vadd.f32 %v217, %v625
  %v889 = vadd.f32 %v218, %v627
  %v890 = vadd.f32 %v219, %v790
  %v891 = vadd.f32 %v220, %v629
  %v892 = vadd.f32 %v221, %v631
  %v893 = vadd.f32 %v222, %v793
  %v894 = vadd.f32 %v223, %v635
  %v895 = vadd.f32 %v224, %v637
  %v896 = vadd.f32 %v225, %v798
  %v897 = vadd.f32 %v226, %v639
  %v898 = vadd.f32 %v227, %v641
  %v899 = vadd.f32 %v228, %v801
  %900 = vst [vmem:[#allocation2] sm:$0xff] %v804
  %901 = vst [vmem:[#allocation2 + $0x8] sm:$0xff] %v805
  %vm902 = vcmask 523264
  %903 = vst.msk [vmem:[#allocation2 + $0x10] sm:$0xff] %vm902, %v806
  %904 = vst [vmem:[#allocation2 + $0x18] sm:$0xff] %v807
  %905 = vst [vmem:[#allocation2 + $0x20] sm:$0xff] %v808
  %906 = vst.msk [vmem:[#allocation2 + $0x28] sm:$0xff] %vm902, %v809
  %907 = vst [vmem:[#allocation2 + $0x30] sm:$0xff] %v810
  %908 = vst [vmem:[#allocation2 + $0x38] sm:$0xff] %v811
  %909 = vst.msk [vmem:[#allocation2 + $0x40] sm:$0xff] %vm902, %v812
  %910 = vst [vmem:[#allocation2 + $0x48] sm:$0xff] %v813
  %911 = vst [vmem:[#allocation2 + $0x50] sm:$0xff] %v814
  %912 = vst.msk [vmem:[#allocation2 + $0x58] sm:$0xff] %vm902, %v815
  %913 = vst [vmem:[#allocation2 + $0x60] sm:$0xff] %v816
  %914 = vst [vmem:[#allocation2 + $0x68] sm:$0xff] %v817
  %915 = vst.msk [vmem:[#allocation2 + $0x70] sm:$0xff] %vm902, %v818
  %916 = vst [vmem:[#allocation2 + $0x78] sm:$0xff] %v819
  %917 = vst [vmem:[#allocation2 + $0x80] sm:$0xff] %v820
  %918 = vst.msk [vmem:[#allocation2 + $0x88] sm:$0xff] %vm902, %v821
  %919 = vst [vmem:[#allocation2 + $0x90] sm:$0xff] %v822
  %920 = vst [vmem:[#allocation2 + $0x98] sm:$0xff] %v823
  %921 = vst.msk [vmem:[#allocation2 + $0xa0] sm:$0xff] %vm902, %v824
  %922 = vst [vmem:[#allocation2 + $0xa8] sm:$0xff] %v825
  %923 = vst [vmem:[#allocation2 + $0xb0] sm:$0xff] %v826
  %924 = vst.msk [vmem:[#allocation2 + $0xb8] sm:$0xff] %vm902, %v827
  %925 = vst [vmem:[#allocation2 + $0xc0] sm:$0xff] %v828
  %926 = vst [vmem:[#allocation2 + $0xc8] sm:$0xff] %v829
  %927 = vst.msk [vmem:[#allocation2 + $0xd0] sm:$0xff] %vm902, %v830
  %928 = vst [vmem:[#allocation2 + $0xd8] sm:$0xff] %v831
  %929 = vst [vmem:[#allocation2 + $0xe0] sm:$0xff] %v832
  %930 = vst.msk [vmem:[#allocation2 + $0xe8] sm:$0xff] %vm902, %v833
  %931 = vst [vmem:[#allocation2 + $0xf0] sm:$0xff] %v834
  %932 = vst [vmem:[#allocation2 + $0xf8] sm:$0xff] %v835
  %933 = vst.msk [vmem:[#allocation2 + $0x100] sm:$0xff] %vm902, %v836
  %934 = vst [vmem:[#allocation2 + $0x108] sm:$0xff] %v837
  %935 = vst [vmem:[#allocation2 + $0x110] sm:$0xff] %v838
  %936 = vst.msk [vmem:[#allocation2 + $0x118] sm:$0xff] %vm902, %v839
  %937 = vst [vmem:[#allocation2 + $0x120] sm:$0xff] %v840
  %938 = vst [vmem:[#allocation2 + $0x128] sm:$0xff] %v841
  %939 = vst.msk [vmem:[#allocation2 + $0x130] sm:$0xff] %vm902, %v842
  %940 = vst [vmem:[#allocation2 + $0x138] sm:$0xff] %v843
  %941 = vst [vmem:[#allocation2 + $0x140] sm:$0xff] %v844
  %942 = vst.msk [vmem:[#allocation2 + $0x148] sm:$0xff] %vm902, %v845
  %943 = vst [vmem:[#allocation2 + $0x150] sm:$0xff] %v846
  %944 = vst [vmem:[#allocation2 + $0x158] sm:$0xff] %v847
  %945 = vst.msk [vmem:[#allocation2 + $0x160] sm:$0xff] %vm902, %v848
  %946 = vst [vmem:[#allocation2 + $0x168] sm:$0xff] %v849
  %947 = vst [vmem:[#allocation2 + $0x170] sm:$0xff] %v850
  %948 = vst.msk [vmem:[#allocation2 + $0x178] sm:$0xff] %vm902, %v851
  %949 = vst [vmem:[#allocation2 + $0x180] sm:$0xff] %v852
  %950 = vst [vmem:[#allocation2 + $0x188] sm:$0xff] %v853
  %951 = vst.msk [vmem:[#allocation2 + $0x190] sm:$0xff] %vm902, %v854
  %952 = vst [vmem:[#allocation2 + $0x198] sm:$0xff] %v855
  %953 = vst [vmem:[#allocation2 + $0x1a0] sm:$0xff] %v856
  %954 = vst.msk [vmem:[#allocation2 + $0x1a8] sm:$0xff] %vm902, %v857
  %955 = vst [vmem:[#allocation2 + $0x1b0] sm:$0xff] %v858
  %956 = vst [vmem:[#allocation2 + $0x1b8] sm:$0xff] %v859
  %957 = vst.msk [vmem:[#allocation2 + $0x1c0] sm:$0xff] %vm902, %v860
  %958 = vst [vmem:[#allocation2 + $0x1c8] sm:$0xff] %v861
  %959 = vst [vmem:[#allocation2 + $0x1d0] sm:$0xff] %v862
  %960 = vst.msk [vmem:[#allocation2 + $0x1d8] sm:$0xff] %vm902, %v863
  %961 = vst [vmem:[#allocation2 + $0x1e0] sm:$0xff] %v864
  %962 = vst [vmem:[#allocation2 + $0x1e8] sm:$0xff] %v865
  %963 = vst.msk [vmem:[#allocation2 + $0x1f0] sm:$0xff] %vm902, %v866
  %964 = vst [vmem:[#allocation2 + $0x1f8] sm:$0xff] %v867
  %965 = vst [vmem:[#allocation2 + $0x200] sm:$0xff] %v868
  %966 = vst.msk [vmem:[#allocation2 + $0x208] sm:$0xff] %vm902, %v869
  %967 = vst [vmem:[#allocation2 + $0x210] sm:$0xff] %v870
  %968 = vst [vmem:[#allocation2 + $0x218] sm:$0xff] %v871
  %969 = vst.msk [vmem:[#allocation2 + $0x220] sm:$0xff] %vm902, %v872
  %970 = vst [vmem:[#allocation2 + $0x228] sm:$0xff] %v873
  %971 = vst [vmem:[#allocation2 + $0x230] sm:$0xff] %v874
  %972 = vst.msk [vmem:[#allocation2 + $0x238] sm:$0xff] %vm902, %v875
  %973 = vst [vmem:[#allocation2 + $0x240] sm:$0xff] %v876
  %974 = vst [vmem:[#allocation2 + $0x248] sm:$0xff] %v877
  %975 = vst.msk [vmem:[#allocation2 + $0x250] sm:$0xff] %vm902, %v878
  %976 = vst [vmem:[#allocation2 + $0x258] sm:$0xff] %v879
  %977 = vst [vmem:[#allocation2 + $0x260] sm:$0xff] %v880
  %978 = vst.msk [vmem:[#allocation2 + $0x268] sm:$0xff] %vm902, %v881
  %979 = vst [vmem:[#allocation2 + $0x270] sm:$0xff] %v882
  %980 = vst [vmem:[#allocation2 + $0x278] sm:$0xff] %v883
  %981 = vst.msk [vmem:[#allocation2 + $0x280] sm:$0xff] %vm902, %v884
  %982 = vst [vmem:[#allocation2 + $0x288] sm:$0xff] %v885
  %983 = vst [vmem:[#allocation2 + $0x290] sm:$0xff] %v886
  %984 = vst.msk [vmem:[#allocation2 + $0x298] sm:$0xff] %vm902, %v887
  %985 = vst [vmem:[#allocation2 + $0x2a0] sm:$0xff] %v888
  %986 = vst [vmem:[#allocation2 + $0x2a8] sm:$0xff] %v889
  %987 = vst.msk [vmem:[#allocation2 + $0x2b0] sm:$0xff] %vm902, %v890
  %988 = vst [vmem:[#allocation2 + $0x2b8] sm:$0xff] %v891
  %989 = vst [vmem:[#allocation2 + $0x2c0] sm:$0xff] %v892
  %990 = vst.msk [vmem:[#allocation2 + $0x2c8] sm:$0xff] %vm902, %v893
  %991 = vst [vmem:[#allocation2 + $0x2d0] sm:$0xff] %v894
  %992 = vst [vmem:[#allocation2 + $0x2d8] sm:$0xff] %v895
  %993 = vst.msk [vmem:[#allocation2 + $0x2e0] sm:$0xff] %vm902, %v896
  %994 = vst [vmem:[#allocation2 + $0x2e8] sm:$0xff] %v897
  %995 = vst [vmem:[#allocation2 + $0x2f0] sm:$0xff] %v898
  %996 = vst.msk [vmem:[#allocation2 + $0x2f8] sm:$0xff] %vm902, %v899
  // Predicated region
  $region18: #{tpu_custom_call.1} parent=0 // pred_check
    %p997 = pneg %p15
  $region19: #{tpu_custom_call.1} parent=0 // pred_check_branch
    %999 = sbr.rel (%p997) target = $region21
  $region20: #{tpu_custom_call.1} parent=0 // pred_region
    %v1000 = vld [vmem:[#allocation2] sm:$0xff]
    %v1001 = vld [vmem:[#allocation2 + $0x8] sm:$0xff]
    %v1002 = vld [vmem:[#allocation2 + $0x10] sm:$0xff]
    %v1003 = vld [vmem:[#allocation2 + $0x18] sm:$0xff]
    %v1004 = vld [vmem:[#allocation2 + $0x20] sm:$0xff]
    %v1005 = vld [vmem:[#allocation2 + $0x28] sm:$0xff]
    %v1006 = vld [vmem:[#allocation2 + $0x30] sm:$0xff]
    %v1007 = vld [vmem:[#allocation2 + $0x38] sm:$0xff]
    %v1008 = vld [vmem:[#allocation2 + $0x40] sm:$0xff]
    %v1009 = vld [vmem:[#allocation2 + $0x48] sm:$0xff]
    %v1010 = vld [vmem:[#allocation2 + $0x50] sm:$0xff]
    %v1011 = vld [vmem:[#allocation2 + $0x58] sm:$0xff]
    %v1012 = vld [vmem:[#allocation2 + $0x60] sm:$0xff]
    %v1013 = vld [vmem:[#allocation2 + $0x68] sm:$0xff]
    %v1014 = vld [vmem:[#allocation2 + $0x70] sm:$0xff]
    %v1015 = vld [vmem:[#allocation2 + $0x78] sm:$0xff]
    %v1016 = vld [vmem:[#allocation2 + $0x80] sm:$0xff]
    %v1017 = vld [vmem:[#allocation2 + $0x88] sm:$0xff]
    %v1018 = vld [vmem:[#allocation2 + $0x90] sm:$0xff]
    %v1019 = vld [vmem:[#allocation2 + $0x98] sm:$0xff]
    %v1020 = vld [vmem:[#allocation2 + $0xa0] sm:$0xff]
    %v1021 = vld [vmem:[#allocation2 + $0xa8] sm:$0xff]
    %v1022 = vld [vmem:[#allocation2 + $0xb0] sm:$0xff]
    %v1023 = vld [vmem:[#allocation2 + $0xb8] sm:$0xff]
    %v1024 = vld [vmem:[#allocation2 + $0xc0] sm:$0xff]
    %v1025 = vld [vmem:[#allocation2 + $0xc8] sm:$0xff]
    %v1026 = vld [vmem:[#allocation2 + $0xd0] sm:$0xff]
    %v1027 = vld [vmem:[#allocation2 + $0xd8] sm:$0xff]
    %v1028 = vld [vmem:[#allocation2 + $0xe0] sm:$0xff]
    %v1029 = vld [vmem:[#allocation2 + $0xe8] sm:$0xff]
    %v1030 = vld [vmem:[#allocation2 + $0xf0] sm:$0xff]
    %v1031 = vld [vmem:[#allocation2 + $0xf8] sm:$0xff]
    %v1032 = vld [vmem:[#allocation2 + $0x100] sm:$0xff]
    %v1033 = vld [vmem:[#allocation2 + $0x108] sm:$0xff]
    %v1034 = vld [vmem:[#allocation2 + $0x110] sm:$0xff]
    %v1035 = vld [vmem:[#allocation2 + $0x118] sm:$0xff]
    %v1036 = vld [vmem:[#allocation2 + $0x120] sm:$0xff]
    %v1037 = vld [vmem:[#allocation2 + $0x128] sm:$0xff]
    %v1038 = vld [vmem:[#allocation2 + $0x130] sm:$0xff]
    %v1039 = vld [vmem:[#allocation2 + $0x138] sm:$0xff]
    %v1040 = vld [vmem:[#allocation2 + $0x140] sm:$0xff]
    %v1041 = vld [vmem:[#allocation2 + $0x148] sm:$0xff]
    %v1042 = vld [vmem:[#allocation2 + $0x150] sm:$0xff]
    %v1043 = vld [vmem:[#allocation2 + $0x158] sm:$0xff]
    %v1044 = vld [vmem:[#allocation2 + $0x160] sm:$0xff]
    %v1045 = vld [vmem:[#allocation2 + $0x168] sm:$0xff]
    %v1046 = vld [vmem:[#allocation2 + $0x170] sm:$0xff]
    %v1047 = vld [vmem:[#allocation2 + $0x178] sm:$0xff]
    %v1048 = vld [vmem:[#allocation2 + $0x180] sm:$0xff]
    %v1049 = vld [vmem:[#allocation2 + $0x188] sm:$0xff]
    %v1050 = vld [vmem:[#allocation2 + $0x190] sm:$0xff]
    %v1051 = vld [vmem:[#allocation2 + $0x198] sm:$0xff]
    %v1052 = vld [vmem:[#allocation2 + $0x1a0] sm:$0xff]
    %v1053 = vld [vmem:[#allocation2 + $0x1a8] sm:$0xff]
    %v1054 = vld [vmem:[#allocation2 + $0x1b0] sm:$0xff]
    %v1055 = vld [vmem:[#allocation2 + $0x1b8] sm:$0xff]
    %v1056 = vld [vmem:[#allocation2 + $0x1c0] sm:$0xff]
    %v1057 = vld [vmem:[#allocation2 + $0x1c8] sm:$0xff]
    %v1058 = vld [vmem:[#allocation2 + $0x1d0] sm:$0xff]
    %v1059 = vld [vmem:[#allocation2 + $0x1d8] sm:$0xff]
    %v1060 = vld [vmem:[#allocation2 + $0x1e0] sm:$0xff]
    %v1061 = vld [vmem:[#allocation2 + $0x1e8] sm:$0xff]
    %v1062 = vld [vmem:[#allocation2 + $0x1f0] sm:$0xff]
    %v1063 = vld [vmem:[#allocation2 + $0x1f8] sm:$0xff]
    %v1064 = vld [vmem:[#allocation2 + $0x200] sm:$0xff]
    %v1065 = vld [vmem:[#allocation2 + $0x208] sm:$0xff]
    %v1066 = vld [vmem:[#allocation2 + $0x210] sm:$0xff]
    %v1067 = vld [vmem:[#allocation2 + $0x218] sm:$0xff]
    %v1068 = vld [vmem:[#allocation2 + $0x220] sm:$0xff]
    %v1069 = vld [vmem:[#allocation2 + $0x228] sm:$0xff]
    %v1070 = vld [vmem:[#allocation2 + $0x230] sm:$0xff]
    %v1071 = vld [vmem:[#allocation2 + $0x238] sm:$0xff]
    %v1072 = vld [vmem:[#allocation2 + $0x240] sm:$0xff]
    %v1073 = vld [vmem:[#allocation2 + $0x248] sm:$0xff]
    %v1074 = vld [vmem:[#allocation2 + $0x250] sm:$0xff]
    %v1075 = vld [vmem:[#allocation2 + $0x258] sm:$0xff]
    %v1076 = vld [vmem:[#allocation2 + $0x260] sm:$0xff]
    %v1077 = vld [vmem:[#allocation2 + $0x268] sm:$0xff]
    %v1078 = vld [vmem:[#allocation2 + $0x270] sm:$0xff]
    %v1079 = vld [vmem:[#allocation2 + $0x278] sm:$0xff]
    %v1080 = vld [vmem:[#allocation2 + $0x280] sm:$0xff]
    %v1081 = vld [vmem:[#allocation2 + $0x288] sm:$0xff]
    %v1082 = vld [vmem:[#allocation2 + $0x290] sm:$0xff]
    %v1083 = vld [vmem:[#allocation2 + $0x298] sm:$0xff]
    %v1084 = vld [vmem:[#allocation2 + $0x2a0] sm:$0xff]
    %v1085 = vld [vmem:[#allocation2 + $0x2a8] sm:$0xff]
    %v1086 = vld [vmem:[#allocation2 + $0x2b0] sm:$0xff]
    %v1087 = vld [vmem:[#allocation2 + $0x2b8] sm:$0xff]
    %v1088 = vld [vmem:[#allocation2 + $0x2c0] sm:$0xff]
    %v1089 = vld [vmem:[#allocation2 + $0x2c8] sm:$0xff]
    %v1090 = vld [vmem:[#allocation2 + $0x2d0] sm:$0xff]
    %v1091 = vld [vmem:[#allocation2 + $0x2d8] sm:$0xff]
    %v1092 = vld [vmem:[#allocation2 + $0x2e0] sm:$0xff]
    %v1093 = vld [vmem:[#allocation2 + $0x2e8] sm:$0xff]
    %v1094 = vld [vmem:[#allocation2 + $0x2f0] sm:$0xff]
    %v1095 = vld [vmem:[#allocation2 + $0x2f8] sm:$0xff]
    %v1096 = vpack.c.bf16 %v1003, %v1000
    %v1097 = vpack.c.bf16 %v1004, %v1001
    %v1098 = vpack.c.bf16 %v1005, %v1002
    %v1099 = vpack.c.bf16 %v1009, %v1006
    %v1100 = vpack.c.bf16 %v1010, %v1007
    %v1101 = vpack.c.bf16 %v1011, %v1008
    %v1102 = vpack.c.bf16 %v1015, %v1012
    %v1103 = vpack.c.bf16 %v1016, %v1013
    %v1104 = vpack.c.bf16 %v1017, %v1014
    %v1105 = vpack.c.bf16 %v1021, %v1018
    %v1106 = vpack.c.bf16 %v1022, %v1019
    %v1107 = vpack.c.bf16 %v1023, %v1020
    %v1108 = vpack.c.bf16 %v1027, %v1024
    %v1109 = vpack.c.bf16 %v1028, %v1025
    %v1110 = vpack.c.bf16 %v1029, %v1026
    %v1111 = vpack.c.bf16 %v1033, %v1030
    %v1112 = vpack.c.bf16 %v1034, %v1031
    %v1113 = vpack.c.bf16 %v1035, %v1032
    %v1114 = vpack.c.bf16 %v1039, %v1036
    %v1115 = vpack.c.bf16 %v1040, %v1037
    %v1116 = vpack.c.bf16 %v1041, %v1038
    %v1117 = vpack.c.bf16 %v1045, %v1042
    %v1118 = vpack.c.bf16 %v1046, %v1043
    %v1119 = vpack.c.bf16 %v1047, %v1044
    %v1120 = vpack.c.bf16 %v1051, %v1048
    %v1121 = vpack.c.bf16 %v1052, %v1049
    %v1122 = vpack.c.bf16 %v1053, %v1050
    %v1123 = vpack.c.bf16 %v1057, %v1054
    %v1124 = vpack.c.bf16 %v1058, %v1055
    %v1125 = vpack.c.bf16 %v1059, %v1056
    %v1126 = vpack.c.bf16 %v1063, %v1060
    %v1127 = vpack.c.bf16 %v1064, %v1061
    %v1128 = vpack.c.bf16 %v1065, %v1062
    %v1129 = vpack.c.bf16 %v1069, %v1066
    %v1130 = vpack.c.bf16 %v1070, %v1067
    %v1131 = vpack.c.bf16 %v1071, %v1068
    %v1132 = vpack.c.bf16 %v1075, %v1072
    %v1133 = vpack.c.bf16 %v1076, %v1073
    %v1134 = vpack.c.bf16 %v1077, %v1074
    %v1135 = vpack.c.bf16 %v1081, %v1078
    %v1136 = vpack.c.bf16 %v1082, %v1079
    %v1137 = vpack.c.bf16 %v1083, %v1080
    %v1138 = vpack.c.bf16 %v1087, %v1084
    %v1139 = vpack.c.bf16 %v1088, %v1085
    %v1140 = vpack.c.bf16 %v1089, %v1086
    %v1141 = vpack.c.bf16 %v1093, %v1090
    %v1142 = vpack.c.bf16 %v1094, %v1091
    %v1143 = vpack.c.bf16 %v1095, %v1092
    %v1192 = vunpack.c.l.b16 %v1096
    %v1193 = vunpack.c.l.b16 %v1097
    %v1194 = vunpack.c.l.b16 %v1098
    %v1195 = vunpack.c.h.b16 %v1096
    %v1196 = vunpack.c.h.b16 %v1097
    %v1197 = vunpack.c.h.b16 %v1098
    %v1198 = vunpack.c.l.b16 %v1099
    %v1199 = vunpack.c.l.b16 %v1100
    %v1200 = vunpack.c.l.b16 %v1101
    %v1201 = vunpack.c.h.b16 %v1099
    %v1202 = vunpack.c.h.b16 %v1100
    %v1203 = vunpack.c.h.b16 %v1101
    %v1204 = vunpack.c.l.b16 %v1102
    %v1205 = vunpack.c.l.b16 %v1103
    %v1206 = vunpack.c.l.b16 %v1104
    %v1207 = vunpack.c.h.b16 %v1102
    %v1208 = vunpack.c.h.b16 %v1103
    %v1209 = vunpack.c.h.b16 %v1104
    %v1210 = vunpack.c.l.b16 %v1105
    %v1211 = vunpack.c.l.b16 %v1106
    %v1212 = vunpack.c.l.b16 %v1107
    %v1213 = vunpack.c.h.b16 %v1105
    %v1214 = vunpack.c.h.b16 %v1106
    %v1215 = vunpack.c.h.b16 %v1107
    %v1216 = vunpack.c.l.b16 %v1108
    %v1217 = vunpack.c.l.b16 %v1109
    %v1218 = vunpack.c.l.b16 %v1110
    %v1219 = vunpack.c.h.b16 %v1108
    %v1220 = vunpack.c.h.b16 %v1109
    %v1221 = vunpack.c.h.b16 %v1110
    %v1222 = vunpack.c.l.b16 %v1111
    %v1223 = vunpack.c.l.b16 %v1112
    %v1224 = vunpack.c.l.b16 %v1113
    %v1225 = vunpack.c.h.b16 %v1111
    %v1226 = vunpack.c.h.b16 %v1112
    %v1227 = vunpack.c.h.b16 %v1113
    %v1228 = vunpack.c.l.b16 %v1114
    %v1229 = vunpack.c.l.b16 %v1115
    %v1230 = vunpack.c.l.b16 %v1116
    %v1231 = vunpack.c.h.b16 %v1114
    %v1232 = vunpack.c.h.b16 %v1115
    %v1233 = vunpack.c.h.b16 %v1116
    %v1234 = vunpack.c.l.b16 %v1117
    %v1235 = vunpack.c.l.b16 %v1118
    %v1236 = vunpack.c.l.b16 %v1119
    %v1237 = vunpack.c.h.b16 %v1117
    %v1238 = vunpack.c.h.b16 %v1118
    %v1239 = vunpack.c.h.b16 %v1119
    %v1240 = vunpack.c.l.b16 %v1120
    %v1241 = vunpack.c.l.b16 %v1121
    %v1242 = vunpack.c.l.b16 %v1122
    %v1243 = vunpack.c.h.b16 %v1120
    %v1244 = vunpack.c.h.b16 %v1121
    %v1245 = vunpack.c.h.b16 %v1122
    %v1246 = vunpack.c.l.b16 %v1123
    %v1247 = vunpack.c.l.b16 %v1124
    %v1248 = vunpack.c.l.b16 %v1125
    %v1249 = vunpack.c.h.b16 %v1123
    %v1250 = vunpack.c.h.b16 %v1124
    %v1251 = vunpack.c.h.b16 %v1125
    %v1252 = vunpack.c.l.b16 %v1126
    %v1253 = vunpack.c.l.b16 %v1127
    %v1254 = vunpack.c.l.b16 %v1128
    %v1255 = vunpack.c.h.b16 %v1126
    %v1256 = vunpack.c.h.b16 %v1127
    %v1257 = vunpack.c.h.b16 %v1128
    %v1258 = vunpack.c.l.b16 %v1129
    %v1259 = vunpack.c.l.b16 %v1130
    %v1260 = vunpack.c.l.b16 %v1131
    %v1261 = vunpack.c.h.b16 %v1129
    %v1262 = vunpack.c.h.b16 %v1130
    %v1263 = vunpack.c.h.b16 %v1131
    %v1264 = vunpack.c.l.b16 %v1132
    %v1265 = vunpack.c.l.b16 %v1133
    %v1266 = vunpack.c.l.b16 %v1134
    %v1267 = vunpack.c.h.b16 %v1132
    %v1268 = vunpack.c.h.b16 %v1133
    %v1269 = vunpack.c.h.b16 %v1134
    %v1270 = vunpack.c.l.b16 %v1135
    %v1271 = vunpack.c.l.b16 %v1136
    %v1272 = vunpack.c.l.b16 %v1137
    %v1273 = vunpack.c.h.b16 %v1135
    %v1274 = vunpack.c.h.b16 %v1136
    %v1275 = vunpack.c.h.b16 %v1137
    %v1276 = vunpack.c.l.b16 %v1138
    %v1277 = vunpack.c.l.b16 %v1139
    %v1278 = vunpack.c.l.b16 %v1140
    %v1279 = vunpack.c.h.b16 %v1138
    %v1280 = vunpack.c.h.b16 %v1139
    %v1281 = vunpack.c.h.b16 %v1140
    %v1282 = vunpack.c.l.b16 %v1141
    %v1283 = vunpack.c.l.b16 %v1142
    %v1284 = vunpack.c.l.b16 %v1143
    %v1285 = vunpack.c.h.b16 %v1141
    %v1286 = vunpack.c.h.b16 %v1142
    %v1287 = vunpack.c.h.b16 %v1143
    %v1288 = vpack.c.b16 %v1193, %v1192
    %v1289 = vpack.c.b16 %v1194, %v1194
    %v1290 = vpack.c.b16 %v1196, %v1195
    %v1291 = vpack.c.b16 %v1197, %v1197
    %v1292 = vpack.c.b16 %v1199, %v1198
    %v1293 = vpack.c.b16 %v1200, %v1200
    %v1294 = vpack.c.b16 %v1202, %v1201
    %v1295 = vpack.c.b16 %v1203, %v1203
    %v1296 = vpack.c.b16 %v1205, %v1204
    %v1297 = vpack.c.b16 %v1206, %v1206
    %v1298 = vpack.c.b16 %v1208, %v1207
    %v1299 = vpack.c.b16 %v1209, %v1209
    %v1300 = vpack.c.b16 %v1211, %v1210
    %v1301 = vpack.c.b16 %v1212, %v1212
    %v1302 = vpack.c.b16 %v1214, %v1213
    %v1303 = vpack.c.b16 %v1215, %v1215
    %v1304 = vpack.c.b16 %v1217, %v1216
    %v1305 = vpack.c.b16 %v1218, %v1218
    %v1306 = vpack.c.b16 %v1220, %v1219
    %v1307 = vpack.c.b16 %v1221, %v1221
    %v1308 = vpack.c.b16 %v1223, %v1222
    %v1309 = vpack.c.b16 %v1224, %v1224
    %v1310 = vpack.c.b16 %v1226, %v1225
    %v1311 = vpack.c.b16 %v1227, %v1227
    %v1312 = vpack.c.b16 %v1229, %v1228
    %v1313 = vpack.c.b16 %v1230, %v1230
    %v1314 = vpack.c.b16 %v1232, %v1231
    %v1315 = vpack.c.b16 %v1233, %v1233
    %v1316 = vpack.c.b16 %v1235, %v1234
    %v1317 = vpack.c.b16 %v1236, %v1236
    %v1318 = vpack.c.b16 %v1238, %v1237
    %v1319 = vpack.c.b16 %v1239, %v1239
    %v1320 = vpack.c.b16 %v1241, %v1240
    %v1321 = vpack.c.b16 %v1242, %v1242
    %v1322 = vpack.c.b16 %v1244, %v1243
    %v1323 = vpack.c.b16 %v1245, %v1245
    %v1324 = vpack.c.b16 %v1247, %v1246
    %v1325 = vpack.c.b16 %v1248, %v1248
    %v1326 = vpack.c.b16 %v1250, %v1249
    %v1327 = vpack.c.b16 %v1251, %v1251
    %v1328 = vpack.c.b16 %v1253, %v1252
    %v1329 = vpack.c.b16 %v1254, %v1254
    %v1330 = vpack.c.b16 %v1256, %v1255
    %v1331 = vpack.c.b16 %v1257, %v1257
    %v1332 = vpack.c.b16 %v1259, %v1258
    %v1333 = vpack.c.b16 %v1260, %v1260
    %v1334 = vpack.c.b16 %v1262, %v1261
    %v1335 = vpack.c.b16 %v1263, %v1263
    %v1336 = vpack.c.b16 %v1265, %v1264
    %v1337 = vpack.c.b16 %v1266, %v1266
    %v1338 = vpack.c.b16 %v1268, %v1267
    %v1339 = vpack.c.b16 %v1269, %v1269
    %v1340 = vpack.c.b16 %v1271, %v1270
    %v1341 = vpack.c.b16 %v1272, %v1272
    %v1342 = vpack.c.b16 %v1274, %v1273
    %v1343 = vpack.c.b16 %v1275, %v1275
    %v1344 = vpack.c.b16 %v1277, %v1276
    %v1345 = vpack.c.b16 %v1278, %v1278
    %v1346 = vpack.c.b16 %v1280, %v1279
    %v1347 = vpack.c.b16 %v1281, %v1281
    %v1348 = vpack.c.b16 %v1283, %v1282
    %v1349 = vpack.c.b16 %v1284, %v1284
    %v1350 = vpack.c.b16 %v1286, %v1285
    %v1351 = vpack.c.b16 %v1287, %v1287
    %1416 = vst [vmem:[%s3] sm:$0xff] %v1288
    %vm1417 = vcmask 519168
    %1418 = vst.msk [vmem:[%s3 + $0x8] sm:$0xf] %vm1417, %v1289
    %1419 = vst [vmem:[%s3 + $0xc] sm:$0xff] %v1290
    %1420 = vst.msk [vmem:[%s3 + $0x14] sm:$0xf] %vm1417, %v1291
    %1421 = vst [vmem:[%s3 + $0x18] sm:$0xff] %v1292
    %1422 = vst.msk [vmem:[%s3 + $0x20] sm:$0xf] %vm1417, %v1293
    %1423 = vst [vmem:[%s3 + $0x24] sm:$0xff] %v1294
    %1424 = vst.msk [vmem:[%s3 + $0x2c] sm:$0xf] %vm1417, %v1295
    %1425 = vst [vmem:[%s3 + $0x30] sm:$0xff] %v1296
    %1426 = vst.msk [vmem:[%s3 + $0x38] sm:$0xf] %vm1417, %v1297
    %1427 = vst [vmem:[%s3 + $0x3c] sm:$0xff] %v1298
    %1428 = vst.msk [vmem:[%s3 + $0x44] sm:$0xf] %vm1417, %v1299
    %1429 = vst [vmem:[%s3 + $0x48] sm:$0xff] %v1300
    %1430 = vst.msk [vmem:[%s3 + $0x50] sm:$0xf] %vm1417, %v1301
    %1431 = vst [vmem:[%s3 + $0x54] sm:$0xff] %v1302
    %1432 = vst.msk [vmem:[%s3 + $0x5c] sm:$0xf] %vm1417, %v1303
    %1433 = vst [vmem:[%s3 + $0x60] sm:$0xff] %v1304
    %1434 = vst.msk [vmem:[%s3 + $0x68] sm:$0xf] %vm1417, %v1305
    %1435 = vst [vmem:[%s3 + $0x6c] sm:$0xff] %v1306
    %1436 = vst.msk [vmem:[%s3 + $0x74] sm:$0xf] %vm1417, %v1307
    %1437 = vst [vmem:[%s3 + $0x78] sm:$0xff] %v1308
    %1438 = vst.msk [vmem:[%s3 + $0x80] sm:$0xf] %vm1417, %v1309
    %1439 = vst [vmem:[%s3 + $0x84] sm:$0xff] %v1310
    %1440 = vst.msk [vmem:[%s3 + $0x8c] sm:$0xf] %vm1417, %v1311
    %1441 = vst [vmem:[%s3 + $0x90] sm:$0xff] %v1312
    %1442 = vst.msk [vmem:[%s3 + $0x98] sm:$0xf] %vm1417, %v1313
    %1443 = vst [vmem:[%s3 + $0x9c] sm:$0xff] %v1314
    %1444 = vst.msk [vmem:[%s3 + $0xa4] sm:$0xf] %vm1417, %v1315
    %1445 = vst [vmem:[%s3 + $0xa8] sm:$0xff] %v1316
    %1446 = vst.msk [vmem:[%s3 + $0xb0] sm:$0xf] %vm1417, %v1317
    %1447 = vst [vmem:[%s3 + $0xb4] sm:$0xff] %v1318
    %1448 = vst.msk [vmem:[%s3 + $0xbc] sm:$0xf] %vm1417, %v1319
    %1449 = vst [vmem:[%s3 + $0xc0] sm:$0xff] %v1320
    %1450 = vst.msk [vmem:[%s3 + $0xc8] sm:$0xf] %vm1417, %v1321
    %1451 = vst [vmem:[%s3 + $0xcc] sm:$0xff] %v1322
    %1452 = vst.msk [vmem:[%s3 + $0xd4] sm:$0xf] %vm1417, %v1323
    %1453 = vst [vmem:[%s3 + $0xd8] sm:$0xff] %v1324
    %1454 = vst.msk [vmem:[%s3 + $0xe0] sm:$0xf] %vm1417, %v1325
    %1455 = vst [vmem:[%s3 + $0xe4] sm:$0xff] %v1326
    %1456 = vst.msk [vmem:[%s3 + $0xec] sm:$0xf] %vm1417, %v1327
    %1457 = vst [vmem:[%s3 + $0xf0] sm:$0xff] %v1328
    %1458 = vst.msk [vmem:[%s3 + $0xf8] sm:$0xf] %vm1417, %v1329
    %1459 = vst [vmem:[%s3 + $0xfc] sm:$0xff] %v1330
    %1460 = vst.msk [vmem:[%s3 + $0x104] sm:$0xf] %vm1417, %v1331
    %1461 = vst [vmem:[%s3 + $0x108] sm:$0xff] %v1332
    %1462 = vst.msk [vmem:[%s3 + $0x110] sm:$0xf] %vm1417, %v1333
    %1463 = vst [vmem:[%s3 + $0x114] sm:$0xff] %v1334
    %1464 = vst.msk [vmem:[%s3 + $0x11c] sm:$0xf] %vm1417, %v1335
    %1465 = vst [vmem:[%s3 + $0x120] sm:$0xff] %v1336
    %1466 = vst.msk [vmem:[%s3 + $0x128] sm:$0xf] %vm1417, %v1337
    %1467 = vst [vmem:[%s3 + $0x12c] sm:$0xff] %v1338
    %1468 = vst.msk [vmem:[%s3 + $0x134] sm:$0xf] %vm1417, %v1339
    %1469 = vst [vmem:[%s3 + $0x138] sm:$0xff] %v1340
    %1470 = vst.msk [vmem:[%s3 + $0x140] sm:$0xf] %vm1417, %v1341
    %1471 = vst [vmem:[%s3 + $0x144] sm:$0xff] %v1342
    %1472 = vst.msk [vmem:[%s3 + $0x14c] sm:$0xf] %vm1417, %v1343
    %1473 = vst [vmem:[%s3 + $0x150] sm:$0xff] %v1344
    %1474 = vst.msk [vmem:[%s3 + $0x158] sm:$0xf] %vm1417, %v1345
    %1475 = vst [vmem:[%s3 + $0x15c] sm:$0xff] %v1346
    %1476 = vst.msk [vmem:[%s3 + $0x164] sm:$0xf] %vm1417, %v1347
    %1477 = vst [vmem:[%s3 + $0x168] sm:$0xff] %v1348
    %1478 = vst.msk [vmem:[%s3 + $0x170] sm:$0xf] %vm1417, %v1349
    %1479 = vst [vmem:[%s3 + $0x174] sm:$0xff] %v1350
    %1480 = vst.msk [vmem:[%s3 + $0x17c] sm:$0xf] %vm1417, %v1351
  $region21: #{tpu_custom_call.1} parent=0 // pred_fallthru
    _
  // Predicated region
  $region22: #{tpu_custom_call.1} parent=0 // pred_check
    _
  $region23: #{tpu_custom_call.1} parent=0 // pred_check_branch
    %1482 = sbr.rel (0) target = $region25
  $region24: #{tpu_custom_call.1} parent=0 // pred_region
    _
  $region25: #{tpu_custom_call.1} parent=0 // pred_fallthru
    _
  // Predicated region
  $region26: #{tpu_custom_call.1} parent=0 // pred_check
    _
  $region27: #{tpu_custom_call.1} parent=0 // pred_check_branch
    %1484 = sbr.rel (0) target = $region29
  $region28: #{tpu_custom_call.1} parent=0 // pred_region
    _
  $region29: #{tpu_custom_call.1} parent=0 // pred_fallthru
    _

</llo_original>
